<compile_context>
chip_gen: v7x
topology: tpu7x:2x2x1
jax: 0.10.0
libtpu: 0.0.40
codegen_flags: <defaults>
</compile_context>

<pallas_src>
import functools

import jax
import jax.numpy as jnp
from jax.experimental import pallas as pl
from jax.experimental.pallas import tpu as pltpu


# -----------------------------------------------------------------------------
# Glue: Preprocess (used only by the pure-JAX reference) and parameter init
# -----------------------------------------------------------------------------
def preprocess(x, T):
    """xnew[n, i, j] = x[n, i+j] if i+j < T else 0.  Reference-only layout op."""
    i = jnp.arange(T)[:, None]
    j = jnp.arange(T)[None, :]
    idx = i + j                                    # (T, T)
    valid = idx < T
    gathered = jnp.take(x, jnp.clip(idx, 0, T - 1), axis=1)   # (N, T, T)
    return jnp.where(valid[None, :, :], gathered, 0.0).astype(jnp.float32)


def init_params(key, T):
    ks = jax.random.split(key, 12)
    u = lambda k, shape: jax.random.uniform(k, shape, dtype=jnp.float32)
    n = lambda k, shape: jax.random.normal(k, shape, dtype=jnp.float32)
    return {
        "T": T,
        "t1": 1e-5 * n(ks[0], (1, 1)), "b1": 1e-5 * n(ks[1], (1, 1)),
        "t2": 1e-5 * n(ks[2], (1, 1)), "b2": 1e-5 * n(ks[3], (1, 1)),
        "t3": 1e-5 * n(ks[4], (1, 1)), "b3": 1e-5 * n(ks[5], (1, 1)),
        "A1_1": u(ks[6], (1, 1, T)), "A1_2": u(ks[7], (1, 1, T)),
        "A1_3": u(ks[8], (1, 1, T)),
        "A2_1": u(ks[9], (1, T)), "A2_2": u(ks[10], (1, T)),
        "A2_3": u(ks[11], (1, T)),
        "A4": u(jax.random.fold_in(key, 99), (1, 3)),
        "beta1_1": jnp.float32(1.0), "beta1_2": jnp.float32(1.0),
        "beta2_1": jnp.float32(1.0), "beta2_2": jnp.float32(1.0),
        "beta3_1": jnp.float32(1.0), "beta3_2": jnp.float32(1.0),
        "beta4": jnp.float32(1.0),
    }


# -----------------------------------------------------------------------------
# Pallas kernel
# -----------------------------------------------------------------------------
def tl_nn5_kernel(scal_ref,     # SMEM (16,) f32: [t, b, beta_b - sum(a2), 0]*3,
                                #                 beta4 - sum(a4), a4sm(3)
                  x1_ref,       # VMEM (tn, T)  raw series, branch 1 (batch on sublanes)
                  x2_ref,       # VMEM (tn, T)  raw series, branch 2
                  x3_ref,       # VMEM (tn, T)  raw series, branch 3
                  wt_ref,       # VMEM (3, T, T)  Toeplitz: Wt[k, m, i] = a1sm[k, m-i] (m>=i)
                  bias1_ref,    # VMEM (3, 1, T)  1 - beta_a + sigmoid(-10) * padded tail
                  a2_ref,       # VMEM (3, T, 1)  softmax(A2_k) columns
                  out_ref):     # VMEM (tn, 1)
    total = None
    for k, x_ref in enumerate((x1_ref, x2_ref, x3_ref)):       # static unroll, 3 branches
        t = scal_ref[4 * k + 0]
        b = scal_ref[4 * k + 1]
        bb = scal_ref[4 * k + 2]                 # beta_b - sum(a2sm)
        a4k = scal_ref[13 + k]

        x = x_ref[...]                           # (tn, T)
        r = b - x * t
        # torch: r[r == b] = -10  (exact-equality sentinel on the raw values;
        # the zero-padded Preprocess positions are folded into bias1's tail).
        r = jnp.where(r == b, jnp.float32(-10.0), r)
        # Single-EUP sigmoid (tanh form) instead of exp + add + reciprocal.
        s = 0.5 * jnp.tanh(0.5 * r) + 0.5        # (tn, T)

        # wb1[n, i] = bias1[i] + sum_{m>=i} a1sm[m-i] * s[n, m]   (MXU)
        wb1 = jnp.dot(s, wt_ref[k],
                      preferred_element_type=jnp.float32) + bias1_ref[k]   # (tn, T)
        act = jnp.clip(wb1, 0.0, 1.0)

        # wb2[n] = beta_b - sum_i a2sm[i] * (1 - act[n, i])
        #        = (beta_b - sum a2sm) + act @ a2sm               (MXU dot, no 1-act pass)
        wb2 = jnp.dot(act, a2_ref[k], preferred_element_type=jnp.float32) + bb   # (tn, 1)
        xr = jnp.clip(wb2, 0.0, 1.0)

        contrib = a4k * xr
        total = contrib if total is None else total + contrib

    # out = clip(beta4 - sum a4*(1 - xr)) = clip((beta4 - sum a4) + sum a4*xr)
    out_ref[...] = jnp.clip(scal_ref[12] + total, 0.0, 1.0)     # (tn, 1)


# -----------------------------------------------------------------------------
# Wrapper
# -----------------------------------------------------------------------------
def _round_up(a, m):
    return ((a + m - 1) // m) * m


def _choose_tile(N, T):
    """Batch-tile size (sublane axis, multiple of 8) from a VMEM budget."""
    lanes = _round_up(T, 128)                 # physical lane footprint of a length-T row
    # 3 inputs double-buffered + ~6 live (tn, T) f32 temporaries per row of batch.
    row_bytes = (3 * 2 + 6) * lanes * 4
    wt_bytes = 3 * _round_up(T, 8) * lanes * 4   # single-buffered Toeplitz operand
    budget = max(2 * 1024 * 1024, 20 * 1024 * 1024 - wt_bytes)
    tn = max(8, (budget // row_bytes) // 8 * 8)
    tn = min(tn, _round_up(N, 8))
    # v7x megacore: guarantee >= 2 grid steps whenever the batch allows it.
    if N >= 16 and (N + tn - 1) // tn < 2:
        tn = max(8, _round_up((N + 1) // 2, 8))
    return tn


@functools.partial(jax.jit, static_argnames=("T",))
def tl_nn5_forward(params, x1, x2, x3, *, T):
    N = x1.shape[0]
    tn = _choose_tile(N, T)
    num_tiles = (N + tn - 1) // tn            # ragged last block handled by Pallas

    # Inputs are consumed in their natural (N, T) layout: no stack / transpose
    # / pad HBM round-trip in the wrapper (astype is a no-op for f32 inputs).
    x1 = x1.astype(jnp.float32)
    x2 = x2.astype(jnp.float32)
    x3 = x3.astype(jnp.float32)

    # ---- parameter-only glue (softmaxes, Toeplitz weights, tail bias) -------
    a1sm = jax.nn.softmax(jnp.stack([params["A1_1"].reshape(T),
                                     params["A1_2"].reshape(T),
                                     params["A1_3"].reshape(T)]), axis=1)   # (3, T)
    a2sm = jax.nn.softmax(jnp.stack([params["A2_1"].reshape(T),
                                     params["A2_2"].reshape(T),
                                     params["A2_3"].reshape(T)]), axis=1)   # (3, T)
    a4sm = jax.nn.softmax(params["A4"].reshape(1, 3), axis=1)[0]            # (3,)

    m_idx = jnp.arange(T)[:, None]
    i_idx = jnp.arange(T)[None, :]
    d = m_idx - i_idx                                                # (T, T)
    wt2 = jnp.where(d[None, :, :] >= 0,
                    jnp.take(a1sm, jnp.clip(d, 0, T - 1), axis=1),
                    0.0).astype(jnp.float32)                         # (3, T, T): [k, m, i]

    sig10 = jax.nn.sigmoid(jnp.float32(-10.0))
    rc = jnp.cumsum(a1sm[:, ::-1], axis=1)[:, ::-1]                  # (3, T) suffix sums
    rc_ext = jnp.concatenate([rc, jnp.zeros((3, 1), jnp.float32)], axis=1)   # (3, T+1)
    tail = sig10 * rc_ext[:, T - jnp.arange(T)]                      # (3, T)
    beta_a = jnp.stack([params["beta1_1"], params["beta2_1"], params["beta3_1"]])
    bias1 = (1.0 - beta_a[:, None] + tail).reshape(3, 1, T).astype(jnp.float32)
    a2col = a2sm.reshape(3, T, 1).astype(jnp.float32)

    # ---- scalar vector for SMEM ---------------------------------------------
    t_s = jnp.stack([params["t1"][0, 0], params["t2"][0, 0], params["t3"][0, 0]])
    b_s = jnp.stack([params["b1"][0, 0], params["b2"][0, 0], params["b3"][0, 0]])
    bb_s = (jnp.stack([params["beta1_2"], params["beta2_2"], params["beta3_2"]])
            - jnp.sum(a2sm, axis=1))                                 # beta_b - sum(a2sm)
    branch_scal = jnp.stack([t_s, b_s, bb_s, jnp.zeros((3,), jnp.float32)],
                            axis=1).reshape(12)
    beta4_off = jnp.reshape(params["beta4"] - jnp.sum(a4sm), (1,))   # beta4 - sum(a4sm)
    scal = jnp.concatenate([branch_scal, beta4_off, a4sm]).astype(jnp.float32)   # (16,)

    # ---- VMEM sizing (explicit, so larger tiles don't spill/reject) ---------
    lanes = _round_up(T, 128)
    est_vmem = ((3 * 2 + 6) * tn * lanes * 4
                + 3 * _round_up(T, 8) * lanes * 4
                + 8 * lanes * 4 * 4)
    vmem_limit = min(32 * 1024 * 1024,
                     max(16 * 1024 * 1024, int(est_vmem * 1.25) + (1 << 20)))

    cost = pl.CostEstimate(
        flops=int(N * 3 * (2 * T * T + 2 * T + 8 * T)),
        transcendentals=int(3 * N * T),
        bytes_accessed=int(4 * (3 * N * T + N + 3 * T * T + 6 * T + 16)),
    )

    out = pl.pallas_call(
        tl_nn5_kernel,
        out_shape=jax.ShapeDtypeStruct((N, 1), jnp.float32),
        grid=(num_tiles,),
        in_specs=[
            pl.BlockSpec((16,), lambda i: (0,),
                         memory_space=pltpu.MemorySpace.SMEM),
            pl.BlockSpec((tn, T), lambda i: (i, 0)),
            pl.BlockSpec((tn, T), lambda i: (i, 0)),
            pl.BlockSpec((tn, T), lambda i: (i, 0)),
            # Grid-invariant operands: single-buffered (revisited every step).
            pl.BlockSpec((3, T, T), lambda i: (0, 0, 0),
                         pipeline_mode=pl.Buffered(1)),
            pl.BlockSpec((3, 1, T), lambda i: (0, 0, 0),
                         pipeline_mode=pl.Buffered(1)),
            pl.BlockSpec((3, T, 1), lambda i: (0, 0, 0),
                         pipeline_mode=pl.Buffered(1)),
        ],
        # Output is N*4 bytes total (~1/(3T) of the input stream), so the
        # lane-sparse (tn, 1) column write is negligible traffic.
        out_specs=pl.BlockSpec((tn, 1), lambda i: (i, 0)),
        compiler_params=pltpu.CompilerParams(
            dimension_semantics=("parallel",),
            vmem_limit_bytes=vmem_limit),
        cost_estimate=cost,
    )(scal, x1, x2, x3, wt2, bias1, a2col)

    return out[:, 0]                                                 # (N,)


# -----------------------------------------------------------------------------
# Pure-JAX reference (mirrors the PyTorch forward exactly)
# -----------------------------------------------------------------------------
def tl_nn5_reference(params, x1, x2, x3):
    T = params["T"]

    def branch(x, t, b, A1, A2, beta_a, beta_b):
        xp = preprocess(x, T)                         # (N, T, T)
        r = b[0, 0] - xp * t[0, 0]
        r = jnp.where(r == b[0, 0], -10.0, r)
        s = jax.nn.sigmoid(r)
        a1sm = jax.nn.softmax(A1.reshape(1, 1, T), axis=2)
        wb1 = 1.0 - beta_a + jnp.sum(a1sm * s, axis=2)       # (N, T)
        act = jnp.clip(wb1, 0.0, 1.0)
        a2sm = jax.nn.softmax(A2.reshape(1, T), axis=1)
        wb2 = beta_b - jnp.sum(a2sm * (1.0 - act), axis=1)   # (N,)
        return jnp.clip(wb2, 0.0, 1.0).reshape(-1, 1)

    r1 = branch(x1, params["t1"], params["b1"], params["A1_1"], params["A2_1"],
                params["beta1_1"], params["beta1_2"])
    r2 = branch(x2, params["t2"], params["b2"], params["A1_2"], params["A2_2"],
                params["beta2_1"], params["beta2_2"])
    r3 = branch(x3, params["t3"], params["b3"], params["A1_3"], params["A2_3"],
                params["beta3_1"], params["beta3_2"])
    xrtn123 = jnp.concatenate([r1, r2, r3], axis=1)   # (N, 3)
    a4sm = jax.nn.softmax(params["A4"], axis=1)
    wb4 = params["beta4"] - jnp.sum(a4sm * (1.0 - xrtn123), axis=1)
    return jnp.clip(wb4, 0.0, 1.0).reshape(-1)


# -----------------------------------------------------------------------------
if __name__ == "__main__":
    T = 8         # sequence length (module's T)
    N = 100       # batch (not a multiple of the tile: exercises the ragged edge)

    key = jax.random.PRNGKey(0)
    kp, k1, k2, k3 = jax.random.split(key, 4)
    params = init_params(kp, T)

    x1 = jax.random.normal(k1, (N, T), dtype=jnp.float32)
    x2 = jax.random.normal(k2, (N, T), dtype=jnp.float32)
    x3 = jax.random.normal(k3, (N, T), dtype=jnp.float32)

    out = tl_nn5_forward(params, x1, x2, x3, T=T)
    out = jax.block_until_ready(out)

    ref = tl_nn5_reference(params, x1, x2, x3)
    assert out.shape == (N,), out.shape
    assert jnp.allclose(out, ref, rtol=1e-5, atol=1e-5), (out, ref)

    print("KERNEL_OK")
</pallas_src>

<mosaic_0001>
module attributes {stable_mosaic.version = 11 : i64} {
  func.func @tl_nn5_kernel(%arg0: i32, %arg1: memref<16xf32, #tpu.memory_space<smem>>, %arg2: memref<56x8xf32, #tpu.memory_space<vmem>>, %arg3: memref<56x8xf32, #tpu.memory_space<vmem>>, %arg4: memref<56x8xf32, #tpu.memory_space<vmem>>, %arg5: memref<3x8x8xf32, #tpu.memory_space<vmem>>, %arg6: memref<3x1x8xf32, #tpu.memory_space<vmem>>, %arg7: memref<3x8x1xf32, #tpu.memory_space<vmem>>, %arg8: memref<56x1xf32, #tpu.memory_space<vmem>>) attributes {dimension_semantics = [#tpu.dimension_semantics<parallel>], iteration_bounds = array<i64: 2>, scalar_prefetch = 0 : i64, scratch_operands = 0 : i64, tpu.core_type = #tpu.core_type<tc>, window_params = [{transform_indices = @transform_0, window_bounds = array<i64: 16>}, {transform_indices = @transform_1, window_bounds = array<i64: 56, 8>}, {transform_indices = @transform_2, window_bounds = array<i64: 56, 8>}, {transform_indices = @transform_3, window_bounds = array<i64: 56, 8>}, {pipeline_mode = #tpu.pipeline_mode<synchronous>, transform_indices = @transform_4, window_bounds = array<i64: 3, 8, 8>}, {pipeline_mode = #tpu.pipeline_mode<synchronous>, transform_indices = @transform_5, window_bounds = array<i64: 3, 1, 8>}, {pipeline_mode = #tpu.pipeline_mode<synchronous>, transform_indices = @transform_6, window_bounds = array<i64: 3, 8, 1>}, {transform_indices = @transform_7, window_bounds = array<i64: 56, 1>}]} {
    %c0 = arith.constant 0 : index
    %0 = memref.load %arg1[%c0] : memref<16xf32, #tpu.memory_space<smem>>
    %c1 = arith.constant 1 : index
    %1 = memref.load %arg1[%c1] : memref<16xf32, #tpu.memory_space<smem>>
    %c2 = arith.constant 2 : index
    %2 = memref.load %arg1[%c2] : memref<16xf32, #tpu.memory_space<smem>>
    %c13 = arith.constant 13 : index
    %3 = memref.load %arg1[%c13] : memref<16xf32, #tpu.memory_space<smem>>
    %c0_0 = arith.constant 0 : index
    %c0_1 = arith.constant 0 : index
    %4 = vector.load %arg2[%c0_0, %c0_1] : memref<56x8xf32, #tpu.memory_space<vmem>>, vector<56x8xf32>
    %5 = vector.broadcast %0 : f32 to vector<56x8xf32>
    %6 = arith.mulf %4, %5 : vector<56x8xf32>
    %7 = vector.broadcast %1 : f32 to vector<56x8xf32>
    %8 = arith.subf %7, %6 : vector<56x8xf32>
    %9 = vector.broadcast %1 : f32 to vector<56x8xf32>
    %10 = arith.cmpf oeq, %8, %9 : vector<56x8xf32>
    %cst = arith.constant -1.000000e+01 : f32
    %11 = vector.broadcast %cst : f32 to vector<56x8xf32>
    %12 = arith.select %10, %11, %8 : vector<56x8xi1>, vector<56x8xf32>
    %cst_2 = arith.constant 5.000000e-01 : f32
    %13 = vector.broadcast %cst_2 : f32 to vector<56x8xf32>
    %14 = arith.mulf %13, %12 : vector<56x8xf32>
    %15 = math.tanh %14 : vector<56x8xf32>
    %cst_3 = arith.constant 5.000000e-01 : f32
    %16 = vector.broadcast %cst_3 : f32 to vector<56x8xf32>
    %17 = arith.mulf %16, %15 : vector<56x8xf32>
    %cst_4 = arith.constant 5.000000e-01 : f32
    %18 = vector.broadcast %cst_4 : f32 to vector<56x8xf32>
    %19 = arith.addf %17, %18 : vector<56x8xf32>
    %c0_5 = arith.constant 0 : index
    %c0_6 = arith.constant 0 : index
    %c0_7 = arith.constant 0 : index
    %20 = vector.load %arg5[%c0_5, %c0_6, %c0_7] : memref<3x8x8xf32, #tpu.memory_space<vmem>>, vector<1x8x8xf32>
    %21 = vector.shape_cast %20 : vector<1x8x8xf32> to vector<8x8xf32>
    %cst_8 = arith.constant dense<0.000000e+00> : vector<56x8xf32>
    %22 = tpu.matmul %19, %21, %cst_8 {dimension_numbers = #tpu.dot_dimension_numbers<[1], [0], [0], [1], [0, 0, 1, 1], [], []>} : vector<56x8xf32>, vector<8x8xf32>, vector<56x8xf32> -> vector<56x8xf32>
    %c0_9 = arith.constant 0 : index
    %c0_10 = arith.constant 0 : index
    %c0_11 = arith.constant 0 : index
    %23 = vector.load %arg6[%c0_9, %c0_10, %c0_11] : memref<3x1x8xf32, #tpu.memory_space<vmem>>, vector<1x1x8xf32>
    %24 = vector.shape_cast %23 : vector<1x1x8xf32> to vector<1x8xf32>
    %25 = vector.broadcast %24 : vector<1x8xf32> to vector<56x8xf32>
    %26 = arith.addf %22, %25 : vector<56x8xf32>
    %cst_12 = arith.constant 0.000000e+00 : f32
    %cst_13 = arith.constant 1.000000e+00 : f32
    %27 = vector.broadcast %cst_12 : f32 to vector<56x8xf32>
    %28 = arith.maximumf %27, %26 : vector<56x8xf32>
    %29 = vector.broadcast %cst_13 : f32 to vector<56x8xf32>
    %30 = arith.minimumf %29, %28 : vector<56x8xf32>
    %c0_14 = arith.constant 0 : index
    %c0_15 = arith.constant 0 : index
    %c0_16 = arith.constant 0 : index
    %31 = vector.load %arg7[%c0_14, %c0_15, %c0_16] : memref<3x8x1xf32, #tpu.memory_space<vmem>>, vector<1x8x1xf32>
    %32 = vector.shape_cast %31 : vector<1x8x1xf32> to vector<8x1xf32>
    %cst_17 = arith.constant dense<0.000000e+00> : vector<56x1xf32>
    %33 = tpu.matmul %30, %32, %cst_17 {dimension_numbers = #tpu.dot_dimension_numbers<[1], [0], [0], [1], [0, 0, 1, 1], [], []>} : vector<56x8xf32>, vector<8x1xf32>, vector<56x1xf32> -> vector<56x1xf32>
    %34 = vector.broadcast %2 : f32 to vector<56x1xf32>
    %35 = arith.addf %33, %34 : vector<56x1xf32>
    %cst_18 = arith.constant 0.000000e+00 : f32
    %cst_19 = arith.constant 1.000000e+00 : f32
    %36 = vector.broadcast %cst_18 : f32 to vector<56x1xf32>
    %37 = arith.maximumf %36, %35 : vector<56x1xf32>
    %38 = vector.broadcast %cst_19 : f32 to vector<56x1xf32>
    %39 = arith.minimumf %38, %37 : vector<56x1xf32>
    %40 = vector.broadcast %3 : f32 to vector<56x1xf32>
    %41 = arith.mulf %40, %39 : vector<56x1xf32>
    %c4 = arith.constant 4 : index
    %42 = memref.load %arg1[%c4] : memref<16xf32, #tpu.memory_space<smem>>
    %c5 = arith.constant 5 : index
    %43 = memref.load %arg1[%c5] : memref<16xf32, #tpu.memory_space<smem>>
    %c6 = arith.constant 6 : index
    %44 = memref.load %arg1[%c6] : memref<16xf32, #tpu.memory_space<smem>>
    %c14 = arith.constant 14 : index
    %45 = memref.load %arg1[%c14] : memref<16xf32, #tpu.memory_space<smem>>
    %c0_20 = arith.constant 0 : index
    %c0_21 = arith.constant 0 : index
    %46 = vector.load %arg3[%c0_20, %c0_21] : memref<56x8xf32, #tpu.memory_space<vmem>>, vector<56x8xf32>
    %47 = vector.broadcast %42 : f32 to vector<56x8xf32>
    %48 = arith.mulf %46, %47 : vector<56x8xf32>
    %49 = vector.broadcast %43 : f32 to vector<56x8xf32>
    %50 = arith.subf %49, %48 : vector<56x8xf32>
    %51 = vector.broadcast %43 : f32 to vector<56x8xf32>
    %52 = arith.cmpf oeq, %50, %51 : vector<56x8xf32>
    %cst_22 = arith.constant -1.000000e+01 : f32
    %53 = vector.broadcast %cst_22 : f32 to vector<56x8xf32>
    %54 = arith.select %52, %53, %50 : vector<56x8xi1>, vector<56x8xf32>
    %cst_23 = arith.constant 5.000000e-01 : f32
    %55 = vector.broadcast %cst_23 : f32 to vector<56x8xf32>
    %56 = arith.mulf %55, %54 : vector<56x8xf32>
    %57 = math.tanh %56 : vector<56x8xf32>
    %cst_24 = arith.constant 5.000000e-01 : f32
    %58 = vector.broadcast %cst_24 : f32 to vector<56x8xf32>
    %59 = arith.mulf %58, %57 : vector<56x8xf32>
    %cst_25 = arith.constant 5.000000e-01 : f32
    %60 = vector.broadcast %cst_25 : f32 to vector<56x8xf32>
    %61 = arith.addf %59, %60 : vector<56x8xf32>
    %c1_26 = arith.constant 1 : index
    %c0_27 = arith.constant 0 : index
    %c0_28 = arith.constant 0 : index
    %62 = vector.load %arg5[%c1_26, %c0_27, %c0_28] : memref<3x8x8xf32, #tpu.memory_space<vmem>>, vector<1x8x8xf32>
    %63 = vector.shape_cast %62 : vector<1x8x8xf32> to vector<8x8xf32>
    %cst_29 = arith.constant dense<0.000000e+00> : vector<56x8xf32>
    %64 = tpu.matmul %61, %63, %cst_29 {dimension_numbers = #tpu.dot_dimension_numbers<[1], [0], [0], [1], [0, 0, 1, 1], [], []>} : vector<56x8xf32>, vector<8x8xf32>, vector<56x8xf32> -> vector<56x8xf32>
    %c1_30 = arith.constant 1 : index
    %c0_31 = arith.constant 0 : index
    %c0_32 = arith.constant 0 : index
    %65 = vector.load %arg6[%c1_30, %c0_31, %c0_32] : memref<3x1x8xf32, #tpu.memory_space<vmem>>, vector<1x1x8xf32>
    %66 = vector.shape_cast %65 : vector<1x1x8xf32> to vector<1x8xf32>
    %67 = vector.broadcast %66 : vector<1x8xf32> to vector<56x8xf32>
    %68 = arith.addf %64, %67 : vector<56x8xf32>
    %cst_33 = arith.constant 0.000000e+00 : f32
    %cst_34 = arith.constant 1.000000e+00 : f32
    %69 = vector.broadcast %cst_33 : f32 to vector<56x8xf32>
    %70 = arith.maximumf %69, %68 : vector<56x8xf32>
    %71 = vector.broadcast %cst_34 : f32 to vector<56x8xf32>
    %72 = arith.minimumf %71, %70 : vector<56x8xf32>
    %c1_35 = arith.constant 1 : index
    %c0_36 = arith.constant 0 : index
    %c0_37 = arith.constant 0 : index
    %73 = vector.load %arg7[%c1_35, %c0_36, %c0_37] : memref<3x8x1xf32, #tpu.memory_space<vmem>>, vector<1x8x1xf32>
    %74 = vector.shape_cast %73 : vector<1x8x1xf32> to vector<8x1xf32>
    %cst_38 = arith.constant dense<0.000000e+00> : vector<56x1xf32>
    %75 = tpu.matmul %72, %74, %cst_38 {dimension_numbers = #tpu.dot_dimension_numbers<[1], [0], [0], [1], [0, 0, 1, 1], [], []>} : vector<56x8xf32>, vector<8x1xf32>, vector<56x1xf32> -> vector<56x1xf32>
    %76 = vector.broadcast %44 : f32 to vector<56x1xf32>
    %77 = arith.addf %75, %76 : vector<56x1xf32>
    %cst_39 = arith.constant 0.000000e+00 : f32
    %cst_40 = arith.constant 1.000000e+00 : f32
    %78 = vector.broadcast %cst_39 : f32 to vector<56x1xf32>
    %79 = arith.maximumf %78, %77 : vector<56x1xf32>
    %80 = vector.broadcast %cst_40 : f32 to vector<56x1xf32>
    %81 = arith.minimumf %80, %79 : vector<56x1xf32>
    %82 = vector.broadcast %45 : f32 to vector<56x1xf32>
    %83 = arith.mulf %82, %81 : vector<56x1xf32>
    %84 = arith.addf %41, %83 : vector<56x1xf32>
    %c8 = arith.constant 8 : index
    %85 = memref.load %arg1[%c8] : memref<16xf32, #tpu.memory_space<smem>>
    %c9 = arith.constant 9 : index
    %86 = memref.load %arg1[%c9] : memref<16xf32, #tpu.memory_space<smem>>
    %c10 = arith.constant 10 : index
    %87 = memref.load %arg1[%c10] : memref<16xf32, #tpu.memory_space<smem>>
    %c15 = arith.constant 15 : index
    %88 = memref.load %arg1[%c15] : memref<16xf32, #tpu.memory_space<smem>>
    %c0_41 = arith.constant 0 : index
    %c0_42 = arith.constant 0 : index
    %89 = vector.load %arg4[%c0_41, %c0_42] : memref<56x8xf32, #tpu.memory_space<vmem>>, vector<56x8xf32>
    %90 = vector.broadcast %85 : f32 to vector<56x8xf32>
    %91 = arith.mulf %89, %90 : vector<56x8xf32>
    %92 = vector.broadcast %86 : f32 to vector<56x8xf32>
    %93 = arith.subf %92, %91 : vector<56x8xf32>
    %94 = vector.broadcast %86 : f32 to vector<56x8xf32>
    %95 = arith.cmpf oeq, %93, %94 : vector<56x8xf32>
    %cst_43 = arith.constant -1.000000e+01 : f32
    %96 = vector.broadcast %cst_43 : f32 to vector<56x8xf32>
    %97 = arith.select %95, %96, %93 : vector<56x8xi1>, vector<56x8xf32>
    %cst_44 = arith.constant 5.000000e-01 : f32
    %98 = vector.broadcast %cst_44 : f32 to vector<56x8xf32>
    %99 = arith.mulf %98, %97 : vector<56x8xf32>
    %100 = math.tanh %99 : vector<56x8xf32>
    %cst_45 = arith.constant 5.000000e-01 : f32
    %101 = vector.broadcast %cst_45 : f32 to vector<56x8xf32>
    %102 = arith.mulf %101, %100 : vector<56x8xf32>
    %cst_46 = arith.constant 5.000000e-01 : f32
    %103 = vector.broadcast %cst_46 : f32 to vector<56x8xf32>
    %104 = arith.addf %102, %103 : vector<56x8xf32>
    %c2_47 = arith.constant 2 : index
    %c0_48 = arith.constant 0 : index
    %c0_49 = arith.constant 0 : index
    %105 = vector.load %arg5[%c2_47, %c0_48, %c0_49] : memref<3x8x8xf32, #tpu.memory_space<vmem>>, vector<1x8x8xf32>
    %106 = vector.shape_cast %105 : vector<1x8x8xf32> to vector<8x8xf32>
    %cst_50 = arith.constant dense<0.000000e+00> : vector<56x8xf32>
    %107 = tpu.matmul %104, %106, %cst_50 {dimension_numbers = #tpu.dot_dimension_numbers<[1], [0], [0], [1], [0, 0, 1, 1], [], []>} : vector<56x8xf32>, vector<8x8xf32>, vector<56x8xf32> -> vector<56x8xf32>
    %c2_51 = arith.constant 2 : index
    %c0_52 = arith.constant 0 : index
    %c0_53 = arith.constant 0 : index
    %108 = vector.load %arg6[%c2_51, %c0_52, %c0_53] : memref<3x1x8xf32, #tpu.memory_space<vmem>>, vector<1x1x8xf32>
    %109 = vector.shape_cast %108 : vector<1x1x8xf32> to vector<1x8xf32>
    %110 = vector.broadcast %109 : vector<1x8xf32> to vector<56x8xf32>
    %111 = arith.addf %107, %110 : vector<56x8xf32>
    %cst_54 = arith.constant 0.000000e+00 : f32
    %cst_55 = arith.constant 1.000000e+00 : f32
    %112 = vector.broadcast %cst_54 : f32 to vector<56x8xf32>
    %113 = arith.maximumf %112, %111 : vector<56x8xf32>
    %114 = vector.broadcast %cst_55 : f32 to vector<56x8xf32>
    %115 = arith.minimumf %114, %113 : vector<56x8xf32>
    %c2_56 = arith.constant 2 : index
    %c0_57 = arith.constant 0 : index
    %c0_58 = arith.constant 0 : index
    %116 = vector.load %arg7[%c2_56, %c0_57, %c0_58] : memref<3x8x1xf32, #tpu.memory_space<vmem>>, vector<1x8x1xf32>
    %117 = vector.shape_cast %116 : vector<1x8x1xf32> to vector<8x1xf32>
    %cst_59 = arith.constant dense<0.000000e+00> : vector<56x1xf32>
    %118 = tpu.matmul %115, %117, %cst_59 {dimension_numbers = #tpu.dot_dimension_numbers<[1], [0], [0], [1], [0, 0, 1, 1], [], []>} : vector<56x8xf32>, vector<8x1xf32>, vector<56x1xf32> -> vector<56x1xf32>
    %119 = vector.broadcast %87 : f32 to vector<56x1xf32>
    %120 = arith.addf %118, %119 : vector<56x1xf32>
    %cst_60 = arith.constant 0.000000e+00 : f32
    %cst_61 = arith.constant 1.000000e+00 : f32
    %121 = vector.broadcast %cst_60 : f32 to vector<56x1xf32>
    %122 = arith.maximumf %121, %120 : vector<56x1xf32>
    %123 = vector.broadcast %cst_61 : f32 to vector<56x1xf32>
    %124 = arith.minimumf %123, %122 : vector<56x1xf32>
    %125 = vector.broadcast %88 : f32 to vector<56x1xf32>
    %126 = arith.mulf %125, %124 : vector<56x1xf32>
    %127 = arith.addf %84, %126 : vector<56x1xf32>
    %c12 = arith.constant 12 : index
    %128 = memref.load %arg1[%c12] : memref<16xf32, #tpu.memory_space<smem>>
    %129 = vector.broadcast %128 : f32 to vector<56x1xf32>
    %130 = arith.addf %129, %127 : vector<56x1xf32>
    %cst_62 = arith.constant 0.000000e+00 : f32
    %cst_63 = arith.constant 1.000000e+00 : f32
    %131 = vector.broadcast %cst_62 : f32 to vector<56x1xf32>
    %132 = arith.maximumf %131, %130 : vector<56x1xf32>
    %133 = vector.broadcast %cst_63 : f32 to vector<56x1xf32>
    %134 = arith.minimumf %133, %132 : vector<56x1xf32>
    %c0_64 = arith.constant 0 : index
    %c0_65 = arith.constant 0 : index
    %135 = vector.load %arg8[%c0_64, %c0_65] : memref<56x1xf32, #tpu.memory_space<vmem>>, vector<56x1xf32>
    tpu.vector_store %arg8[%c0_64, %c0_65], %134 {strides = array<i32>} : memref<56x1xf32, #tpu.memory_space<vmem>>, vector<56x1xf32>,
    return
  }
  func.func @transform_0(%arg0: i32) -> i32 {
    %c0_i32 = arith.constant 0 : i32
    %c0_i32_0 = arith.constant 0 : i32
    return %c0_i32 : i32
  }
  func.func @transform_1(%arg0: i32) -> (i32, i32) {
    %c0_i32 = arith.constant 0 : i32
    %c0_i32_0 = arith.constant 0 : i32
    return %arg0, %c0_i32 : i32, i32
  }
  func.func @transform_2(%arg0: i32) -> (i32, i32) {
    %c0_i32 = arith.constant 0 : i32
    %c0_i32_0 = arith.constant 0 : i32
    return %arg0, %c0_i32 : i32, i32
  }
  func.func @transform_3(%arg0: i32) -> (i32, i32) {
    %c0_i32 = arith.constant 0 : i32
    %c0_i32_0 = arith.constant 0 : i32
    return %arg0, %c0_i32 : i32, i32
  }
  func.func @transform_4(%arg0: i32) -> (i32, i32, i32) {
    %c0_i32 = arith.constant 0 : i32
    %c0_i32_0 = arith.constant 0 : i32
    %c0_i32_1 = arith.constant 0 : i32
    %c0_i32_2 = arith.constant 0 : i32
    return %c0_i32, %c0_i32_0, %c0_i32_1 : i32, i32, i32
  }
  func.func @transform_5(%arg0: i32) -> (i32, i32, i32) {
    %c0_i32 = arith.constant 0 : i32
    %c0_i32_0 = arith.constant 0 : i32
    %c0_i32_1 = arith.constant 0 : i32
    %c0_i32_2 = arith.constant 0 : i32
    return %c0_i32, %c0_i32_0, %c0_i32_1 : i32, i32, i32
  }
  func.func @transform_6(%arg0: i32) -> (i32, i32, i32) {
    %c0_i32 = arith.constant 0 : i32
    %c0_i32_0 = arith.constant 0 : i32
    %c0_i32_1 = arith.constant 0 : i32
    %c0_i32_2 = arith.constant 0 : i32
    return %c0_i32, %c0_i32_0, %c0_i32_1 : i32, i32, i32
  }
  func.func @transform_7(%arg0: i32) -> (i32, i32) {
    %c0_i32 = arith.constant 0 : i32
    %c0_i32_0 = arith.constant 0 : i32
    return %arg0, %c0_i32 : i32, i32
  }
}

</mosaic_0001>

<llo_original>
// kernel: tl_nn5_forward.1
$region0: #{tl_nn5_forward.1}
  #allocation0 [shape = 'u32[]', space=smem, size = 0x4, offset = 0x4, fixed_abs, tag = 'smem constant byte address 0x4 - core index']
  #allocation1 [shape = 'u32[144,128]{1,0:T(1,128)}', space=vmem, size = 0x12000, scoped, tag = 'internal scratch']
  %s0 = inlined_call_operand.vmem [shape: f32[16], index: 0, kind: input, shape index: {}]
  %s1 = inlined_call_operand.vmem [shape: f32[100,8], index: 1, kind: input, shape index: {}]
  %s2 = inlined_call_operand.vmem [shape: f32[100,8], index: 2, kind: input, shape index: {}]
  %s3 = inlined_call_operand.vmem [shape: f32[100,8], index: 3, kind: input, shape index: {}]
  %s4 = inlined_call_operand.vmem [shape: f32[3,8,8], index: 4, kind: input, shape index: {}]
  %s5 = inlined_call_operand.vmem [shape: f32[3,1,8], index: 5, kind: input, shape index: {}]
  %s6 = inlined_call_operand.vmem [shape: f32[3,8,1], index: 6, kind: input, shape index: {}]
  %s7 = inlined_call_operand.vmem [shape: f32[100,1], index: 7, kind: output, shape index: {}]
  %s8 = sld [smem:[#allocation0]]
  $region113: #{tl_nn5_forward.1} parent=0
    _
  %s10 = ssub.s32 1, %s8
  %s11 = scalar_select 0, %s10, %s8
  $region1: #{tl_nn5_forward.1} parent=0
    #allocation2 [shape = 'u8[512]{0}', space=smem, size = 0x200, scoped, tag = 'input window, operand 0, single buffered']
    #allocation3 [shape = 's32[2]{0}', space=sflag, size = 0x8, scoped, tag = 'scoped memory for tl_nn5_forward.1']
    #allocation4 [shape = 'u8[57344]{0}', space=vmem, size = 0xe000, scoped, tag = 'output window, operand 0']
    %12 = vsyncpa [#allocation3], 0
    loop: start=0, step=1, limit=4
    $region2: #{tl_nn5_forward.1} parent=1 // loop_pre_header
      _
    $region3: #{tl_nn5_forward.1} parent=1 // loop_header
      %s14 = sphi 0, %s18
      %p15 = scmp.ge.s32.totalorder %s14, 4
      %s22 = sphi 0, %s22
      %s24 = sphi 0, %s22
      %s25 = sphi 0, %s24
      %s39 = sphi 0, %s25
      %s45 = sphi 0, %s47
      %s48 = sphi 0, %s45
      %s49 = sphi 0, %s48
      %s65 = sphi 0, %s49
      %s71 = sphi 0, %s73
      %s74 = sphi 0, %s71
      %s75 = sphi 0, %s74
      %s91 = sphi 0, %s75
      %s97 = sphi 0, %s99
      %s100 = sphi 0, %s97
      %s101 = sphi 0, %s100
      %s117 = sphi 0, %s101
      %s121 = sphi 0, %s121
      %s123 = sphi 0, %s121
      %s124 = sphi 0, %s123
      %s138 = sphi 0, %s124
      %s142 = sphi 0, %s142
      %s144 = sphi 0, %s142
      %s145 = sphi 0, %s144
      %s159 = sphi 0, %s145
      %s163 = sphi 0, %s163
      %s165 = sphi 0, %s163
      %s166 = sphi 0, %s165
      %s180 = sphi 0, %s166
      %s186 = sphi 0, %s188
      %s189 = sphi 0, %s186
      %s190 = sphi 0, %s189
      %s206 = sphi 0, %s190
    $region4: #{tl_nn5_forward.1} parent=1 // loop_header_branch
      %17 = sbr.rel (%p15) target = $region8
    $region5: #{tl_nn5_forward.1} parent=1 // loop_body
      %s19 = ssub.s32 %s14, 1
      %s20 = ssub.s32 %s14, 2
      %s21 = sadd.s32 %s14, 1
      %s23 = sadd.s32 %s22, 1
      %p26 = scmp.eq.s32.totalorder %s14, 1
      %p27 = scmp.ne.s32.totalorder %s22, %s24
      %p28 = scmp.eq.s32.totalorder %s14, 0
      %p29 = por %p27, %p28
      %p30 = scmp.ne.s32.totalorder %s22, %s24
      %p31 = scmp.eq.s32.totalorder %s19, 1
      %p32 = por %p30, %p31
      %p33 = scmp.ne.s32.totalorder %s24, %s25
      %p34 = scmp.eq.s32.totalorder %s19, 0
      %p35 = por %p33, %p34
      %p36 = scmp.ne.s32.totalorder %s24, %s25
      %p37 = scmp.eq.s32.totalorder %s20, 1
      %p38 = por %p36, %p37
      %p40 = scmp.ne.s32.totalorder %s25, %s39
      %p41 = scmp.eq.s32.totalorder %s20, 0
      %p42 = por %p40, %p41
      %s43 = ssub.s32 %s14, %s21
      %p44 = scmp.eq.s32.totalorder %s43, 0
      %s46 = sadd.s32 %s45, 1
      %s47 = scalar_select %p44, %s45, %s46
      %p50 = pneg %p44
      %p51 = scmp.eq.s32.totalorder %s14, 1
      %p52 = por %p50, %p51
      %p53 = scmp.ne.s32.totalorder %s45, %s48
      %p54 = scmp.eq.s32.totalorder %s14, 0
      %p55 = por %p53, %p54
      %p56 = scmp.ne.s32.totalorder %s45, %s48
      %p57 = scmp.eq.s32.totalorder %s19, 1
      %p58 = por %p56, %p57
      %p59 = scmp.ne.s32.totalorder %s48, %s49
      %p60 = scmp.eq.s32.totalorder %s19, 0
      %p61 = por %p59, %p60
      %p62 = scmp.ne.s32.totalorder %s48, %s49
      %p63 = scmp.eq.s32.totalorder %s20, 1
      %p64 = por %p62, %p63
      %p66 = scmp.ne.s32.totalorder %s49, %s65
      %p67 = scmp.eq.s32.totalorder %s20, 0
      %p68 = por %p66, %p67
      %s69 = ssub.s32 %s14, %s21
      %p70 = scmp.eq.s32.totalorder %s69, 0
      %s72 = sadd.s32 %s71, 1
      %s73 = scalar_select %p70, %s71, %s72
      %p76 = pneg %p70
      %p77 = scmp.eq.s32.totalorder %s14, 1
      %p78 = por %p76, %p77
      %p79 = scmp.ne.s32.totalorder %s71, %s74
      %p80 = scmp.eq.s32.totalorder %s14, 0
      %p81 = por %p79, %p80
      %p82 = scmp.ne.s32.totalorder %s71, %s74
      %p83 = scmp.eq.s32.totalorder %s19, 1
      %p84 = por %p82, %p83
      %p85 = scmp.ne.s32.totalorder %s74, %s75
      %p86 = scmp.eq.s32.totalorder %s19, 0
      %p87 = por %p85, %p86
      %p88 = scmp.ne.s32.totalorder %s74, %s75
      %p89 = scmp.eq.s32.totalorder %s20, 1
      %p90 = por %p88, %p89
      %p92 = scmp.ne.s32.totalorder %s75, %s91
      %p93 = scmp.eq.s32.totalorder %s20, 0
      %p94 = por %p92, %p93
      %s95 = ssub.s32 %s14, %s21
      %p96 = scmp.eq.s32.totalorder %s95, 0
      %s98 = sadd.s32 %s97, 1
      %s99 = scalar_select %p96, %s97, %s98
      %p102 = pneg %p96
      %p103 = scmp.eq.s32.totalorder %s14, 1
      %p104 = por %p102, %p103
      %p105 = scmp.ne.s32.totalorder %s97, %s100
      %p106 = scmp.eq.s32.totalorder %s14, 0
      %p107 = por %p105, %p106
      %p108 = scmp.ne.s32.totalorder %s97, %s100
      %p109 = scmp.eq.s32.totalorder %s19, 1
      %p110 = por %p108, %p109
      %p111 = scmp.ne.s32.totalorder %s100, %s101
      %p112 = scmp.eq.s32.totalorder %s19, 0
      %p113 = por %p111, %p112
      %p114 = scmp.ne.s32.totalorder %s100, %s101
      %p115 = scmp.eq.s32.totalorder %s20, 1
      %p116 = por %p114, %p115
      %p118 = scmp.ne.s32.totalorder %s101, %s117
      %p119 = scmp.eq.s32.totalorder %s20, 0
      %p120 = por %p118, %p119
      %s122 = sadd.s32 %s121, 1
      %p125 = scmp.eq.s32.totalorder %s14, 1
      %p126 = scmp.ne.s32.totalorder %s121, %s123
      %p127 = scmp.eq.s32.totalorder %s14, 0
      %p128 = por %p126, %p127
      %p129 = scmp.ne.s32.totalorder %s121, %s123
      %p130 = scmp.eq.s32.totalorder %s19, 1
      %p131 = por %p129, %p130
      %p132 = scmp.ne.s32.totalorder %s123, %s124
      %p133 = scmp.eq.s32.totalorder %s19, 0
      %p134 = por %p132, %p133
      %p135 = scmp.ne.s32.totalorder %s123, %s124
      %p136 = scmp.eq.s32.totalorder %s20, 1
      %p137 = por %p135, %p136
      %p139 = scmp.ne.s32.totalorder %s124, %s138
      %p140 = scmp.eq.s32.totalorder %s20, 0
      %p141 = por %p139, %p140
      %s143 = sadd.s32 %s142, 1
      %p146 = scmp.eq.s32.totalorder %s14, 1
      %p147 = scmp.ne.s32.totalorder %s142, %s144
      %p148 = scmp.eq.s32.totalorder %s14, 0
      %p149 = por %p147, %p148
      %p150 = scmp.ne.s32.totalorder %s142, %s144
      %p151 = scmp.eq.s32.totalorder %s19, 1
      %p152 = por %p150, %p151
      %p153 = scmp.ne.s32.totalorder %s144, %s145
      %p154 = scmp.eq.s32.totalorder %s19, 0
      %p155 = por %p153, %p154
      %p156 = scmp.ne.s32.totalorder %s144, %s145
      %p157 = scmp.eq.s32.totalorder %s20, 1
      %p158 = por %p156, %p157
      %p160 = scmp.ne.s32.totalorder %s145, %s159
      %p161 = scmp.eq.s32.totalorder %s20, 0
      %p162 = por %p160, %p161
      %s164 = sadd.s32 %s163, 1
      %p167 = scmp.eq.s32.totalorder %s14, 1
      %p168 = scmp.ne.s32.totalorder %s163, %s165
      %p169 = scmp.eq.s32.totalorder %s14, 0
      %p170 = por %p168, %p169
      %p171 = scmp.ne.s32.totalorder %s163, %s165
      %p172 = scmp.eq.s32.totalorder %s19, 1
      %p173 = por %p171, %p172
      %p174 = scmp.ne.s32.totalorder %s165, %s166
      %p175 = scmp.eq.s32.totalorder %s19, 0
      %p176 = por %p174, %p175
      %p177 = scmp.ne.s32.totalorder %s165, %s166
      %p178 = scmp.eq.s32.totalorder %s20, 1
      %p179 = por %p177, %p178
      %p181 = scmp.ne.s32.totalorder %s166, %s180
      %p182 = scmp.eq.s32.totalorder %s20, 0
      %p183 = por %p181, %p182
      %s184 = ssub.s32 %s14, %s21
      %p185 = scmp.eq.s32.totalorder %s184, 0
      %s187 = sadd.s32 %s186, 1
      %s188 = scalar_select %p185, %s186, %s187
      %p191 = pneg %p185
      %p192 = scmp.eq.s32.totalorder %s14, 1
      %p193 = por %p191, %p192
      %p194 = scmp.ne.s32.totalorder %s186, %s189
      %p195 = scmp.eq.s32.totalorder %s14, 0
      %p196 = por %p194, %p195
      %p197 = scmp.ne.s32.totalorder %s186, %s189
      %p198 = scmp.eq.s32.totalorder %s19, 1
      %p199 = por %p197, %p198
      %p200 = scmp.ne.s32.totalorder %s189, %s190
      %p201 = scmp.eq.s32.totalorder %s19, 0
      %p202 = por %p200, %p201
      %p203 = scmp.ne.s32.totalorder %s189, %s190
      %p204 = scmp.eq.s32.totalorder %s20, 1
      %p205 = por %p203, %p204
      %p207 = scmp.ne.s32.totalorder %s190, %s206
      %p208 = scmp.eq.s32.totalorder %s20, 0
      %p209 = por %p207, %p208
      %p210 = scmp.le.s32.totalorder 1, %s14
      %p211 = scmp.lt.s32.totalorder %s14, 3
      %p212 = pnand %p210, %p211
      %p213 = pneg %p212
      // Predicated region
      $region9: #{tl_nn5_forward.1} parent=5 // pred_check
        _
      $region10: #{tl_nn5_forward.1} parent=5 // pred_check_branch
        %215 = sbr.rel (%p212) target = $region12
      $region11: #{tl_nn5_forward.1} parent=5 // pred_region
        %s216 = ssub.s32 %s14, 1
        // Predicated region
        $region13: #{tl_nn5_forward.1} parent=11 // pred_check
          %p217 = pneg %p35
        $region14: #{tl_nn5_forward.1} parent=11 // pred_check_branch
          %219 = sbr.rel (%p217) target = $region16
        $region15: #{tl_nn5_forward.1} parent=11 // pred_region
          %s221 = ssub.s32 16, 16
          %222 = vsyncadd [#allocation3], %s221
          %s224 = sshll.u32 %s0, 4
          %s225 = int_to_ptr.vmem [resolvable:$true] %s224
          %227 = dma.vmem_to_smem %s225, 16, [#allocation2], [#allocation3]
        $region16: #{tl_nn5_forward.1} parent=11 // pred_fallthru
          _
        // Predicated region
        $region17: #{tl_nn5_forward.1} parent=11 // pred_check
          %p228 = pneg %p134
        $region18: #{tl_nn5_forward.1} parent=11 // pred_check_branch
          %230 = sbr.rel (%p228) target = $region20
        $region19: #{tl_nn5_forward.1} parent=11 // pred_region
          _
        $region20: #{tl_nn5_forward.1} parent=11 // pred_fallthru
          _
        // Predicated region
        $region21: #{tl_nn5_forward.1} parent=11 // pred_check
          %p231 = pneg %p155
        $region22: #{tl_nn5_forward.1} parent=11 // pred_check_branch
          %233 = sbr.rel (%p231) target = $region24
        $region23: #{tl_nn5_forward.1} parent=11 // pred_region
          _
        $region24: #{tl_nn5_forward.1} parent=11 // pred_fallthru
          _
        // Predicated region
        $region25: #{tl_nn5_forward.1} parent=11 // pred_check
          %p234 = pneg %p176
        $region26: #{tl_nn5_forward.1} parent=11 // pred_check_branch
          %236 = sbr.rel (%p234) target = $region28
        $region27: #{tl_nn5_forward.1} parent=11 // pred_region
          _
        $region28: #{tl_nn5_forward.1} parent=11 // pred_fallthru
          _
      $region12: #{tl_nn5_forward.1} parent=5 // pred_fallthru
        _
      %p237 = scmp.lt.s32.totalorder %s14, 2
      // Predicated region
      $region29: #{tl_nn5_forward.1} parent=5 // pred_check
        %p238 = pneg %p237
      $region30: #{tl_nn5_forward.1} parent=5 // pred_check_branch
        %240 = sbr.rel (%p238) target = $region32
      $region31: #{tl_nn5_forward.1} parent=5 // pred_region
        // Predicated region
        $region33: #{tl_nn5_forward.1} parent=31 // pred_check
          %p241 = pneg %p55
        $region34: #{tl_nn5_forward.1} parent=31 // pred_check_branch
          %243 = sbr.rel (%p241) target = $region36
        $region35: #{tl_nn5_forward.1} parent=31 // pred_region
          %s244 = smul.u32 7, %s14
          %s245 = ssub.s32 13, %s244
          %p246 = scmp.lt.s32.totalorder %s245, 7
          %s247 = scalar_select %p246, %s245, 7
          %s248 = smul.u32 128, %s247
          %p249 = scmp.lt.s32.totalorder %s244, 12
          %s250 = scalar_select %p249, %s244, 12
          %s251 = smul.addr %s250, 8
          %s252 = scalar_lea.vmem %s1, %s251
          %s253 = smul.u32 7, %s14
          %s254 = ssub.s32 13, %s253
          %p255 = scmp.lt.s32.totalorder %s254, 7
          %s256 = scalar_select %p255, %s254, 7
          %s257 = smul.u32 128, %s256
        $region36: #{tl_nn5_forward.1} parent=31 // pred_fallthru
          _
        // Predicated region
        $region37: #{tl_nn5_forward.1} parent=31 // pred_check
          %p258 = pneg %p81
        $region38: #{tl_nn5_forward.1} parent=31 // pred_check_branch
          %260 = sbr.rel (%p258) target = $region40
        $region39: #{tl_nn5_forward.1} parent=31 // pred_region
          %s261 = smul.u32 7, %s14
          %s262 = ssub.s32 13, %s261
          %p263 = scmp.lt.s32.totalorder %s262, 7
          %s264 = scalar_select %p263, %s262, 7
          %s265 = smul.u32 128, %s264
          %p266 = scmp.lt.s32.totalorder %s261, 12
          %s267 = scalar_select %p266, %s261, 12
          %s268 = smul.addr %s267, 8
          %s269 = scalar_lea.vmem %s2, %s268
          %s270 = smul.u32 7, %s14
          %s271 = ssub.s32 13, %s270
          %p272 = scmp.lt.s32.totalorder %s271, 7
          %s273 = scalar_select %p272, %s271, 7
          %s274 = smul.u32 128, %s273
        $region40: #{tl_nn5_forward.1} parent=31 // pred_fallthru
          _
        // Predicated region
        $region41: #{tl_nn5_forward.1} parent=31 // pred_check
          %p275 = pneg %p107
        $region42: #{tl_nn5_forward.1} parent=31 // pred_check_branch
          %277 = sbr.rel (%p275) target = $region44
        $region43: #{tl_nn5_forward.1} parent=31 // pred_region
          %s278 = smul.u32 7, %s14
          %s279 = ssub.s32 13, %s278
          %p280 = scmp.lt.s32.totalorder %s279, 7
          %s281 = scalar_select %p280, %s279, 7
          %s282 = smul.u32 128, %s281
          %p283 = scmp.lt.s32.totalorder %s278, 12
          %s284 = scalar_select %p283, %s278, 12
          %s285 = smul.addr %s284, 8
          %s286 = scalar_lea.vmem %s3, %s285
          %s287 = smul.u32 7, %s14
          %s288 = ssub.s32 13, %s287
          %p289 = scmp.lt.s32.totalorder %s288, 7
          %s290 = scalar_select %p289, %s288, 7
          %s291 = smul.u32 128, %s290
        $region44: #{tl_nn5_forward.1} parent=31 // pred_fallthru
          _
      $region32: #{tl_nn5_forward.1} parent=5 // pred_fallthru
        _
      %p292 = scmp.le.s32.totalorder 1, %s14
      %p293 = scmp.lt.s32.totalorder %s14, 3
      %p294 = pnand %p292, %p293
      %p295 = pneg %p294
      // Predicated region
      $region45: #{tl_nn5_forward.1} parent=5 // pred_check
        _
      $region46: #{tl_nn5_forward.1} parent=5 // pred_check_branch
        %297 = sbr.rel (%p294) target = $region48
      $region47: #{tl_nn5_forward.1} parent=5 // pred_region
        %s298 = ssub.s32 %s14, 1
        // Predicated region
        $region49: #{tl_nn5_forward.1} parent=47 // pred_check
          %p299 = pneg %p35
        $region50: #{tl_nn5_forward.1} parent=47 // pred_check_branch
          %301 = sbr.rel (%p299) target = $region52
        $region51: #{tl_nn5_forward.1} parent=47 // pred_region
          %302 = dma.done [#allocation3], 16
        $region52: #{tl_nn5_forward.1} parent=47 // pred_fallthru
          _
        %303 = sfence
        %p304 = pneg %p35
        %p305 = pneg %p32
        %s306 = smul.u32 7, %s19
        %s307 = ssub.s32 13, %s306
        %p308 = scmp.lt.s32.totalorder %s307, 7
        %s309 = scalar_select %p308, %s307, 7
        %s310 = smul.u32 128, %s309
        %p311 = scmp.lt.s32.totalorder %s306, 12
        %s312 = scalar_select %p311, %s306, 12
        %s313 = smul.addr %s312, 8
        %s314 = scalar_lea.vmem %s1, %s313
        %p315 = pneg %p61
        %p316 = pneg %p58
        %s317 = smul.u32 7, %s19
        %s318 = ssub.s32 13, %s317
        %p319 = scmp.lt.s32.totalorder %s318, 7
        %s320 = scalar_select %p319, %s318, 7
        %s321 = smul.u32 128, %s320
        %p322 = scmp.lt.s32.totalorder %s317, 12
        %s323 = scalar_select %p322, %s317, 12
        %s324 = smul.addr %s323, 8
        %s325 = scalar_lea.vmem %s2, %s324
        %p326 = pneg %p87
        %p327 = pneg %p84
        %s328 = smul.u32 7, %s19
        %s329 = ssub.s32 13, %s328
        %p330 = scmp.lt.s32.totalorder %s329, 7
        %s331 = scalar_select %p330, %s329, 7
        %s332 = smul.u32 128, %s331
        %p333 = scmp.lt.s32.totalorder %s328, 12
        %s334 = scalar_select %p333, %s328, 12
        %s335 = smul.addr %s334, 8
        %s336 = scalar_lea.vmem %s3, %s335
        %p337 = pneg %p113
        %p338 = pneg %p110
        %p339 = pneg %p134
        %p340 = pneg %p131
        %p341 = pneg %p155
        %p342 = pneg %p152
        %p343 = pneg %p176
        %p344 = pneg %p173
        %p345 = pneg %p202
        %p346 = pneg %p199
        %s347 = sand.u32 %s189, 1
        %s348 = sand.u32 %s189, 1
        %s349 = smul.addr %s348, 56
        %s350 = scalar_lea.vmem [#allocation4], %s349
        %s351 = smul.u32 7, %s19
        %s352 = ssub.s32 13, %s351
        %p353 = scmp.lt.s32.totalorder %s352, 7
        %s354 = scalar_select %p353, %s352, 7
        %s355 = smul.u32 128, %s354
        %p356 = scmp.lt.s32.totalorder %s351, 12
        %s357 = scalar_select %p356, %s351, 12
        %s358 = smul.addr %s357, 8
        %s359 = scalar_lea.vmem %s1, %s358
        %s360 = smul.u32 7, %s19
        %s361 = ssub.s32 13, %s360
        %p362 = scmp.lt.s32.totalorder %s361, 7
        %s363 = scalar_select %p362, %s361, 7
        %s364 = smul.u32 128, %s363
        %s365 = smul.u32 7, %s19
        %s366 = ssub.s32 13, %s365
        %p367 = scmp.lt.s32.totalorder %s366, 7
        %s368 = scalar_select %p367, %s366, 7
        %s369 = smul.u32 128, %s368
        %p370 = scmp.lt.s32.totalorder %s365, 12
        %s371 = scalar_select %p370, %s365, 12
        %s372 = smul.addr %s371, 8
        %s373 = scalar_lea.vmem %s2, %s372
        %s374 = smul.u32 7, %s19
        %s375 = ssub.s32 13, %s374
        %p376 = scmp.lt.s32.totalorder %s375, 7
        %s377 = scalar_select %p376, %s375, 7
        %s378 = smul.u32 128, %s377
        %s379 = smul.u32 7, %s19
        %s380 = ssub.s32 13, %s379
        %p381 = scmp.lt.s32.totalorder %s380, 7
        %s382 = scalar_select %p381, %s380, 7
        %s383 = smul.u32 128, %s382
        %p384 = scmp.lt.s32.totalorder %s379, 12
        %s385 = scalar_select %p384, %s379, 12
        %s386 = smul.addr %s385, 8
        %s387 = scalar_lea.vmem %s3, %s386
        %s388 = smul.u32 7, %s19
        %s389 = ssub.s32 13, %s388
        %p390 = scmp.lt.s32.totalorder %s389, 7
        %s391 = scalar_select %p390, %s389, 7
        %s392 = smul.u32 128, %s391
        %s393 = smul.u32 7, %s19
        %s394 = ssub.s32 13, %s393
        %p395 = scmp.lt.s32.totalorder %s394, 7
        %s396 = scalar_select %p395, %s394, 7
        %s397 = smul.u32 128, %s396
        %s398 = sld [smem:[#allocation2]]
        %s399 = sld [smem:[#allocation2 + $0x1]]
        %s400 = sld [smem:[#allocation2 + $0x2]]
        %s401 = sld [smem:[#allocation2 + $0xd]]
        %v402 = vld [vmem:[%s359] sm:$0xff]
        %v403 = vld [vmem:[%s359 + $0x8] sm:$0xff]
        %v404 = vld [vmem:[%s359 + $0x10] sm:$0xff]
        %v405 = vld [vmem:[%s359 + $0x18] sm:$0xff]
        %v406 = vld [vmem:[%s359 + $0x20] sm:$0xff]
        %v407 = vld [vmem:[%s359 + $0x28] sm:$0xff]
        %v408 = vld [vmem:[%s359 + $0x30] sm:$0xff]
        %v409 = vstv %s398
        %v410 = vmul.f32 %v402, %v409
        %v411 = vmul.f32 %v403, %v409
        %v412 = vmul.f32 %v404, %v409
        %v413 = vmul.f32 %v405, %v409
        %v414 = vmul.f32 %v406, %v409
        %v415 = vmul.f32 %v407, %v409
        %v416 = vmul.f32 %v408, %v409
        %v417 = vstv %s399
        %v418 = vsub.f32 %v417, %v410
        %v419 = vsub.f32 %v417, %v411
        %v420 = vsub.f32 %v417, %v412
        %v421 = vsub.f32 %v417, %v413
        %v422 = vsub.f32 %v417, %v414
        %v423 = vsub.f32 %v417, %v415
        %v424 = vsub.f32 %v417, %v416
        %vm425 = vcmp.eq.f32.partialorder %v418, %v417
        %vm426 = vcmp.eq.f32.partialorder %v419, %v417
        %vm427 = vcmp.eq.f32.partialorder %v420, %v417
        %vm428 = vcmp.eq.f32.partialorder %v421, %v417
        %vm429 = vcmp.eq.f32.partialorder %v422, %v417
        %vm430 = vcmp.eq.f32.partialorder %v423, %v417
        %vm431 = vcmp.eq.f32.partialorder %v424, %v417
        %v432 = vsel %vm425, -10.0, %v418
        %v433 = vsel %vm426, -10.0, %v419
        %v434 = vsel %vm427, -10.0, %v420
        %v435 = vsel %vm428, -10.0, %v421
        %v436 = vsel %vm429, -10.0, %v422
        %v437 = vsel %vm430, -10.0, %v423
        %v438 = vsel %vm431, -10.0, %v424
        %v439 = vmul.f32 %v432, 0.5
        %v440 = vmul.f32 %v433, 0.5
        %v441 = vmul.f32 %v434, 0.5
        %v442 = vmul.f32 %v435, 0.5
        %v443 = vmul.f32 %v436, 0.5
        %v444 = vmul.f32 %v437, 0.5
        %v445 = vmul.f32 %v438, 0.5
        %v446 = vtanh.pop %v439
        %v447 = vtanh.pop %v440
        %v448 = vtanh.pop %v441
        %v449 = vtanh.pop %v442
        %v450 = vtanh.pop %v443
        %v451 = vtanh.pop %v444
        %v452 = vtanh.pop %v445
        %v453 = vmul.f32 %v446, 0.5
        %v454 = vmul.f32 %v447, 0.5
        %v455 = vmul.f32 %v448, 0.5
        %v456 = vmul.f32 %v449, 0.5
        %v457 = vmul.f32 %v450, 0.5
        %v458 = vmul.f32 %v451, 0.5
        %v459 = vmul.f32 %v452, 0.5
        %v460 = vadd.f32 %v453, 0.5
        %v461 = vadd.f32 %v454, 0.5
        %v462 = vadd.f32 %v455, 0.5
        %v463 = vadd.f32 %v456, 0.5
        %v464 = vadd.f32 %v457, 0.5
        %v465 = vadd.f32 %v458, 0.5
        %v466 = vadd.f32 %v459, 0.5
        %v467 = vld [vmem:[%s4] sm:$0xff]
        %v468 = vld [vmem:[%s5] sm:$0x1]
        %v470 = vlaneseq
        %v471 = vshrl.u32 %v470, 7
        %v472 = vsub.s32 0, %v471
        %v473 = vrot.slane %v468, %v472
        %vm475 = vcmask 64512
        %v477 = vsel %vm475, %v460, 0
        %v480 = vsel %vm475, %v461, 0
        %v483 = vsel %vm475, %v462, 0
        %v486 = vsel %vm475, %v463, 0
        %v489 = vsel %vm475, %v464, 0
        %v492 = vsel %vm475, %v465, 0
        %v495 = vsel %vm475, %v466, 0
        %497 = vmatprep.subr.mxu0 0.0
        %498 = vmatpush1.msra.mxu0 %v467
        %499 = vmatprep.subr.mxu0 0.0
        %500 = vmatpush1.msra.mxu0 0.0
        %501 = vmatprep.subr.mxu0 0.0
        %502 = vmatpush1.msra.mxu0 0.0
        %503 = vmatprep.subr.mxu0 0.0
        %504 = vmatpush1.msra.mxu0 0.0
        %505 = vmatprep.subr.mxu0 0.0
        %506 = vmatpush1.msra.mxu0 0.0
        %507 = vmatprep.subr.mxu0 0.0
        %508 = vmatpush1.msra.mxu0 0.0
        %509 = vmatprep.subr.mxu0 0.0
        %510 = vmatpush1.msra.mxu0 0.0
        %511 = vmatprep.subr.mxu0 0.0
        %512 = vmatpush1.msra.mxu0 0.0
        %513 = vmatprep.subr.mxu0 0.0
        %514 = vmatpush1.msra.mxu0 0.0
        %515 = vmatprep.subr.mxu0 0.0
        %516 = vmatpush1.msra.mxu0 0.0
        %517 = vmatprep.subr.mxu0 0.0
        %518 = vmatpush1.msra.mxu0 0.0
        %519 = vmatprep.subr.mxu0 0.0
        %520 = vmatpush1.msra.mxu0 0.0
        %521 = vmatprep.subr.mxu0 0.0
        %522 = vmatpush1.msra.mxu0 0.0
        %523 = vmatprep.subr.mxu0 0.0
        %524 = vmatpush1.msra.mxu0 0.0
        %525 = vmatprep.subr.mxu0 0.0
        %526 = vmatpush1.msra.mxu0 0.0
        %527 = vmatprep.subr.mxu0 0.0
        %528 = vmatpush1.msra.mxu0 0.0
        %529 = vmatprep.subr.mxu0 0.0
        %530 = vmatpush1.msra.mxu0 0.0
        %531 = vmatprep.subr.mxu0 0.0
        %532 = vmatpush1.msra.mxu0 0.0
        %533 = vmatprep.subr.mxu0 0.0
        %534 = vmatpush1.msra.mxu0 0.0
        %535 = vmatprep.subr.mxu0 0.0
        %536 = vmatpush1.msra.mxu0 0.0
        %537 = vmatprep.subr.mxu0 0.0
        %538 = vmatpush1.msra.mxu0 0.0
        %539 = vmatprep.subr.mxu0 0.0
        %540 = vmatpush1.msra.mxu0 0.0
        %541 = vmatprep.subr.mxu0 0.0
        %542 = vmatpush1.msra.mxu0 0.0
        %543 = vmatprep.subr.mxu0 0.0
        %544 = vmatpush1.msra.mxu0 0.0
        %545 = vmatprep.subr.mxu0 0.0
        %546 = vmatpush1.msra.mxu0 0.0
        %547 = vmatprep.subr.mxu0 0.0
        %548 = vmatpush1.msra.mxu0 0.0
        %549 = vmatprep.subr.mxu0 0.0
        %550 = vmatpush1.msra.mxu0 0.0
        %551 = vmatprep.subr.mxu0 0.0
        %552 = vmatpush1.msra.mxu0 0.0
        %553 = vmatprep.subr.mxu0 0.0
        %554 = vmatpush1.msra.mxu0 0.0
        %555 = vmatprep.subr.mxu0 0.0
        %556 = vmatpush1.msra.mxu0 0.0
        %557 = vmatprep.subr.mxu0 0.0
        %558 = vmatpush1.msra.mxu0 0.0
        %559 = vmatprep.subr.mxu0 0.0
        %560 = vmatpush1.msra.mxu0 0.0
        %561 = vmatprep.mubr.f32.mxu0 0.0
        %562 = vmatmul.mubr.f32.gmra.mrb[0].mxu0 %v477
        %v563 = vpop.f32.mrb[0].mxu0
        %v564 = vadd.f32 %v473, %v563
        %v565 = vpop.f32.mrb[0].mxu0
        %566 = vmatprep.mubr.f32.mxu0 0.0
        %567 = vmatmul.mubr.f32.gmra.mrb[0].mxu0 %v480
        %v568 = vpop.f32.mrb[0].mxu0
        %v569 = vadd.f32 %v473, %v568
        %v570 = vpop.f32.mrb[0].mxu0
        %571 = vmatprep.mubr.f32.mxu0 0.0
        %572 = vmatmul.mubr.f32.gmra.mrb[0].mxu0 %v483
        %v573 = vpop.f32.mrb[0].mxu0
        %v574 = vadd.f32 %v473, %v573
        %v575 = vpop.f32.mrb[0].mxu0
        %576 = vmatprep.mubr.f32.mxu0 0.0
        %577 = vmatmul.mubr.f32.gmra.mrb[0].mxu0 %v486
        %v578 = vpop.f32.mrb[0].mxu0
        %v579 = vadd.f32 %v473, %v578
        %v580 = vpop.f32.mrb[0].mxu0
        %581 = vmatprep.mubr.f32.mxu0 0.0
        %582 = vmatmul.mubr.f32.gmra.mrb[0].mxu0 %v489
        %v583 = vpop.f32.mrb[0].mxu0
        %v584 = vadd.f32 %v473, %v583
        %v585 = vpop.f32.mrb[0].mxu0
        %586 = vmatprep.mubr.f32.mxu0 0.0
        %587 = vmatmul.mubr.f32.gmra.mrb[0].mxu0 %v492
        %v588 = vpop.f32.mrb[0].mxu0
        %v589 = vadd.f32 %v473, %v588
        %v590 = vpop.f32.mrb[0].mxu0
        %591 = vmatprep.mubr.f32.mxu0 0.0
        %592 = vmatmul.mubr.f32.gmra.mrb[0].mxu0 %v495
        %v593 = vpop.f32.mrb[0].mxu0
        %v594 = vadd.f32 %v473, %v593
        %v595 = vpop.f32.mrb[0].mxu0
        %596 = vdwg.mxu0
        %v597 = vmax.f32 %v564, 0.0
        %v598 = vmax.f32 %v569, 0.0
        %v599 = vmax.f32 %v574, 0.0
        %v600 = vmax.f32 %v579, 0.0
        %v601 = vmax.f32 %v584, 0.0
        %v602 = vmax.f32 %v589, 0.0
        %v603 = vmax.f32 %v594, 0.0
        %v604 = vmin.f32 %v597, 1.0
        %v605 = vmin.f32 %v598, 1.0
        %v606 = vmin.f32 %v599, 1.0
        %v607 = vmin.f32 %v600, 1.0
        %v608 = vmin.f32 %v601, 1.0
        %v609 = vmin.f32 %v602, 1.0
        %v610 = vmin.f32 %v603, 1.0
        %v611 = vld [vmem:[%s6] sm:$0xff]
        %v612 = vstv %s400
        %v614 = vsel %vm475, %v604, 0
        %v617 = vsel %vm475, %v605, 0
        %v620 = vsel %vm475, %v606, 0
        %v623 = vsel %vm475, %v607, 0
        %v626 = vsel %vm475, %v608, 0
        %v629 = vsel %vm475, %v609, 0
        %v632 = vsel %vm475, %v610, 0
        %634 = vmatprep.subr.mxu0 0.0
        %635 = vmatpush1.msra.mxu0 %v611
        %636 = vmatprep.subr.mxu0 0.0
        %637 = vmatpush1.msra.mxu0 0.0
        %638 = vmatprep.subr.mxu0 0.0
        %639 = vmatpush1.msra.mxu0 0.0
        %640 = vmatprep.subr.mxu0 0.0
        %641 = vmatpush1.msra.mxu0 0.0
        %642 = vmatprep.subr.mxu0 0.0
        %643 = vmatpush1.msra.mxu0 0.0
        %644 = vmatprep.subr.mxu0 0.0
        %645 = vmatpush1.msra.mxu0 0.0
        %646 = vmatprep.subr.mxu0 0.0
        %647 = vmatpush1.msra.mxu0 0.0
        %648 = vmatprep.subr.mxu0 0.0
        %649 = vmatpush1.msra.mxu0 0.0
        %650 = vmatprep.subr.mxu0 0.0
        %651 = vmatpush1.msra.mxu0 0.0
        %652 = vmatprep.subr.mxu0 0.0
        %653 = vmatpush1.msra.mxu0 0.0
        %654 = vmatprep.subr.mxu0 0.0
        %655 = vmatpush1.msra.mxu0 0.0
        %656 = vmatprep.subr.mxu0 0.0
        %657 = vmatpush1.msra.mxu0 0.0
        %658 = vmatprep.subr.mxu0 0.0
        %659 = vmatpush1.msra.mxu0 0.0
        %660 = vmatprep.subr.mxu0 0.0
        %661 = vmatpush1.msra.mxu0 0.0
        %662 = vmatprep.subr.mxu0 0.0
        %663 = vmatpush1.msra.mxu0 0.0
        %664 = vmatprep.subr.mxu0 0.0
        %665 = vmatpush1.msra.mxu0 0.0
        %666 = vmatprep.subr.mxu0 0.0
        %667 = vmatpush1.msra.mxu0 0.0
        %668 = vmatprep.subr.mxu0 0.0
        %669 = vmatpush1.msra.mxu0 0.0
        %670 = vmatprep.subr.mxu0 0.0
        %671 = vmatpush1.msra.mxu0 0.0
        %672 = vmatprep.subr.mxu0 0.0
        %673 = vmatpush1.msra.mxu0 0.0
        %674 = vmatprep.subr.mxu0 0.0
        %675 = vmatpush1.msra.mxu0 0.0
        %676 = vmatprep.subr.mxu0 0.0
        %677 = vmatpush1.msra.mxu0 0.0
        %678 = vmatprep.subr.mxu0 0.0
        %679 = vmatpush1.msra.mxu0 0.0
        %680 = vmatprep.subr.mxu0 0.0
        %681 = vmatpush1.msra.mxu0 0.0
        %682 = vmatprep.subr.mxu0 0.0
        %683 = vmatpush1.msra.mxu0 0.0
        %684 = vmatprep.subr.mxu0 0.0
        %685 = vmatpush1.msra.mxu0 0.0
        %686 = vmatprep.subr.mxu0 0.0
        %687 = vmatpush1.msra.mxu0 0.0
        %688 = vmatprep.subr.mxu0 0.0
        %689 = vmatpush1.msra.mxu0 0.0
        %690 = vmatprep.subr.mxu0 0.0
        %691 = vmatpush1.msra.mxu0 0.0
        %692 = vmatprep.subr.mxu0 0.0
        %693 = vmatpush1.msra.mxu0 0.0
        %694 = vmatprep.subr.mxu0 0.0
        %695 = vmatpush1.msra.mxu0 0.0
        %696 = vmatprep.subr.mxu0 0.0
        %697 = vmatpush1.msra.mxu0 0.0
        %698 = vmatprep.mubr.f32.mxu0 0.0
        %699 = vmatmul.mubr.f32.gmra.mrb[0].mxu0 %v614
        %v700 = vpop.f32.mrb[0].mxu0
        %v701 = vadd.f32 %v612, %v700
        %v702 = vpop.f32.mrb[0].mxu0
        %703 = vmatprep.mubr.f32.mxu0 0.0
        %704 = vmatmul.mubr.f32.gmra.mrb[0].mxu0 %v617
        %v705 = vpop.f32.mrb[0].mxu0
        %v706 = vadd.f32 %v612, %v705
        %v707 = vpop.f32.mrb[0].mxu0
        %708 = vmatprep.mubr.f32.mxu0 0.0
        %709 = vmatmul.mubr.f32.gmra.mrb[0].mxu0 %v620
        %v710 = vpop.f32.mrb[0].mxu0
        %v711 = vadd.f32 %v612, %v710
        %v712 = vpop.f32.mrb[0].mxu0
        %713 = vmatprep.mubr.f32.mxu0 0.0
        %714 = vmatmul.mubr.f32.gmra.mrb[0].mxu0 %v623
        %v715 = vpop.f32.mrb[0].mxu0
        %v716 = vadd.f32 %v612, %v715
        %v717 = vpop.f32.mrb[0].mxu0
        %718 = vmatprep.mubr.f32.mxu0 0.0
        %719 = vmatmul.mubr.f32.gmra.mrb[0].mxu0 %v626
        %v720 = vpop.f32.mrb[0].mxu0
        %v721 = vadd.f32 %v612, %v720
        %v722 = vpop.f32.mrb[0].mxu0
        %723 = vmatprep.mubr.f32.mxu0 0.0
        %724 = vmatmul.mubr.f32.gmra.mrb[0].mxu0 %v629
        %v725 = vpop.f32.mrb[0].mxu0
        %v726 = vadd.f32 %v612, %v725
        %v727 = vpop.f32.mrb[0].mxu0
        %728 = vmatprep.mubr.f32.mxu0 0.0
        %729 = vmatmul.mubr.f32.gmra.mrb[0].mxu0 %v632
        %v730 = vpop.f32.mrb[0].mxu0
        %v731 = vadd.f32 %v612, %v730
        %v732 = vpop.f32.mrb[0].mxu0
        %733 = vdwg.mxu0
        %v734 = vmax.f32 %v701, 0.0
        %v735 = vmax.f32 %v706, 0.0
        %v736 = vmax.f32 %v711, 0.0
        %v737 = vmax.f32 %v716, 0.0
        %v738 = vmax.f32 %v721, 0.0
        %v739 = vmax.f32 %v726, 0.0
        %v740 = vmax.f32 %v731, 0.0
        %v741 = vmin.f32 %v734, 1.0
        %v742 = vmin.f32 %v735, 1.0
        %v743 = vmin.f32 %v736, 1.0
        %v744 = vmin.f32 %v737, 1.0
        %v745 = vmin.f32 %v738, 1.0
        %v746 = vmin.f32 %v739, 1.0
        %v747 = vmin.f32 %v740, 1.0
        %v748 = vstv %s401
        %v749 = vmul.f32 %v748, %v741
        %v750 = vmul.f32 %v748, %v742
        %v751 = vmul.f32 %v748, %v743
        %v752 = vmul.f32 %v748, %v744
        %v753 = vmul.f32 %v748, %v745
        %v754 = vmul.f32 %v748, %v746
        %v755 = vmul.f32 %v748, %v747
        %s756 = sld [smem:[#allocation2 + $0x4]]
        %s757 = sld [smem:[#allocation2 + $0x5]]
        %s758 = sld [smem:[#allocation2 + $0x6]]
        %s759 = sld [smem:[#allocation2 + $0xe]]
        %v760 = vld [vmem:[%s373] sm:$0xff]
        %v761 = vld [vmem:[%s373 + $0x8] sm:$0xff]
        %v762 = vld [vmem:[%s373 + $0x10] sm:$0xff]
        %v763 = vld [vmem:[%s373 + $0x18] sm:$0xff]
        %v764 = vld [vmem:[%s373 + $0x20] sm:$0xff]
        %v765 = vld [vmem:[%s373 + $0x28] sm:$0xff]
        %v766 = vld [vmem:[%s373 + $0x30] sm:$0xff]
        %v767 = vstv %s756
        %v768 = vmul.f32 %v760, %v767
        %v769 = vmul.f32 %v761, %v767
        %v770 = vmul.f32 %v762, %v767
        %v771 = vmul.f32 %v763, %v767
        %v772 = vmul.f32 %v764, %v767
        %v773 = vmul.f32 %v765, %v767
        %v774 = vmul.f32 %v766, %v767
        %v775 = vstv %s757
        %v776 = vsub.f32 %v775, %v768
        %v777 = vsub.f32 %v775, %v769
        %v778 = vsub.f32 %v775, %v770
        %v779 = vsub.f32 %v775, %v771
        %v780 = vsub.f32 %v775, %v772
        %v781 = vsub.f32 %v775, %v773
        %v782 = vsub.f32 %v775, %v774
        %vm783 = vcmp.eq.f32.partialorder %v776, %v775
        %vm784 = vcmp.eq.f32.partialorder %v777, %v775
        %vm785 = vcmp.eq.f32.partialorder %v778, %v775
        %vm786 = vcmp.eq.f32.partialorder %v779, %v775
        %vm787 = vcmp.eq.f32.partialorder %v780, %v775
        %vm788 = vcmp.eq.f32.partialorder %v781, %v775
        %vm789 = vcmp.eq.f32.partialorder %v782, %v775
        %v790 = vsel %vm783, -10.0, %v776
        %v791 = vsel %vm784, -10.0, %v777
        %v792 = vsel %vm785, -10.0, %v778
        %v793 = vsel %vm786, -10.0, %v779
        %v794 = vsel %vm787, -10.0, %v780
        %v795 = vsel %vm788, -10.0, %v781
        %v796 = vsel %vm789, -10.0, %v782
        %v797 = vmul.f32 %v790, 0.5
        %v798 = vmul.f32 %v791, 0.5
        %v799 = vmul.f32 %v792, 0.5
        %v800 = vmul.f32 %v793, 0.5
        %v801 = vmul.f32 %v794, 0.5
        %v802 = vmul.f32 %v795, 0.5
        %v803 = vmul.f32 %v796, 0.5
        %v804 = vtanh.pop %v797
        %v805 = vtanh.pop %v798
        %v806 = vtanh.pop %v799
        %v807 = vtanh.pop %v800
        %v808 = vtanh.pop %v801
        %v809 = vtanh.pop %v802
        %v810 = vtanh.pop %v803
        %v811 = vmul.f32 %v804, 0.5
        %v812 = vmul.f32 %v805, 0.5
        %v813 = vmul.f32 %v806, 0.5
        %v814 = vmul.f32 %v807, 0.5
        %v815 = vmul.f32 %v808, 0.5
        %v816 = vmul.f32 %v809, 0.5
        %v817 = vmul.f32 %v810, 0.5
        %v818 = vadd.f32 %v811, 0.5
        %v819 = vadd.f32 %v812, 0.5
        %v820 = vadd.f32 %v813, 0.5
        %v821 = vadd.f32 %v814, 0.5
        %v822 = vadd.f32 %v815, 0.5
        %v823 = vadd.f32 %v816, 0.5
        %v824 = vadd.f32 %v817, 0.5
        %s825 = scalar_lea.vmem %s4, 8
        %v826 = vld [vmem:[%s825] sm:$0xff]
        %s827 = scalar_lea.vmem %s5, 1
        %v828 = vld [vmem:[%s827] sm:$0x1]
        %v830 = vlaneseq
        %v831 = vshrl.u32 %v830, 7
        %v832 = vsub.s32 0, %v831
        %v833 = vrot.slane %v828, %v832
        %v836 = vsel %vm475, %v818, 0
        %v839 = vsel %vm475, %v819, 0
        %v842 = vsel %vm475, %v820, 0
        %v845 = vsel %vm475, %v821, 0
        %v848 = vsel %vm475, %v822, 0
        %v851 = vsel %vm475, %v823, 0
        %v854 = vsel %vm475, %v824, 0
        %856 = vmatprep.subr.mxu0 0.0
        %857 = vmatpush1.msra.mxu0 %v826
        %858 = vmatprep.subr.mxu0 0.0
        %859 = vmatpush1.msra.mxu0 0.0
        %860 = vmatprep.subr.mxu0 0.0
        %861 = vmatpush1.msra.mxu0 0.0
        %862 = vmatprep.subr.mxu0 0.0
        %863 = vmatpush1.msra.mxu0 0.0
        %864 = vmatprep.subr.mxu0 0.0
        %865 = vmatpush1.msra.mxu0 0.0
        %866 = vmatprep.subr.mxu0 0.0
        %867 = vmatpush1.msra.mxu0 0.0
        %868 = vmatprep.subr.mxu0 0.0
        %869 = vmatpush1.msra.mxu0 0.0
        %870 = vmatprep.subr.mxu0 0.0
        %871 = vmatpush1.msra.mxu0 0.0
        %872 = vmatprep.subr.mxu0 0.0
        %873 = vmatpush1.msra.mxu0 0.0
        %874 = vmatprep.subr.mxu0 0.0
        %875 = vmatpush1.msra.mxu0 0.0
        %876 = vmatprep.subr.mxu0 0.0
        %877 = vmatpush1.msra.mxu0 0.0
        %878 = vmatprep.subr.mxu0 0.0
        %879 = vmatpush1.msra.mxu0 0.0
        %880 = vmatprep.subr.mxu0 0.0
        %881 = vmatpush1.msra.mxu0 0.0
        %882 = vmatprep.subr.mxu0 0.0
        %883 = vmatpush1.msra.mxu0 0.0
        %884 = vmatprep.subr.mxu0 0.0
        %885 = vmatpush1.msra.mxu0 0.0
        %886 = vmatprep.subr.mxu0 0.0
        %887 = vmatpush1.msra.mxu0 0.0
        %888 = vmatprep.subr.mxu0 0.0
        %889 = vmatpush1.msra.mxu0 0.0
        %890 = vmatprep.subr.mxu0 0.0
        %891 = vmatpush1.msra.mxu0 0.0
        %892 = vmatprep.subr.mxu0 0.0
        %893 = vmatpush1.msra.mxu0 0.0
        %894 = vmatprep.subr.mxu0 0.0
        %895 = vmatpush1.msra.mxu0 0.0
        %896 = vmatprep.subr.mxu0 0.0
        %897 = vmatpush1.msra.mxu0 0.0
        %898 = vmatprep.subr.mxu0 0.0
        %899 = vmatpush1.msra.mxu0 0.0
        %900 = vmatprep.subr.mxu0 0.0
        %901 = vmatpush1.msra.mxu0 0.0
        %902 = vmatprep.subr.mxu0 0.0
        %903 = vmatpush1.msra.mxu0 0.0
        %904 = vmatprep.subr.mxu0 0.0
        %905 = vmatpush1.msra.mxu0 0.0
        %906 = vmatprep.subr.mxu0 0.0
        %907 = vmatpush1.msra.mxu0 0.0
        %908 = vmatprep.subr.mxu0 0.0
        %909 = vmatpush1.msra.mxu0 0.0
        %910 = vmatprep.subr.mxu0 0.0
        %911 = vmatpush1.msra.mxu0 0.0
        %912 = vmatprep.subr.mxu0 0.0
        %913 = vmatpush1.msra.mxu0 0.0
        %914 = vmatprep.subr.mxu0 0.0
        %915 = vmatpush1.msra.mxu0 0.0
        %916 = vmatprep.subr.mxu0 0.0
        %917 = vmatpush1.msra.mxu0 0.0
        %918 = vmatprep.subr.mxu0 0.0
        %919 = vmatpush1.msra.mxu0 0.0
        %920 = vmatprep.mubr.f32.mxu0 0.0
        %921 = vmatmul.mubr.f32.gmra.mrb[0].mxu0 %v836
        %v922 = vpop.f32.mrb[0].mxu0
        %v923 = vadd.f32 %v833, %v922
        %v924 = vpop.f32.mrb[0].mxu0
        %925 = vmatprep.mubr.f32.mxu0 0.0
        %926 = vmatmul.mubr.f32.gmra.mrb[0].mxu0 %v839
        %v927 = vpop.f32.mrb[0].mxu0
        %v928 = vadd.f32 %v833, %v927
        %v929 = vpop.f32.mrb[0].mxu0
        %930 = vmatprep.mubr.f32.mxu0 0.0
        %931 = vmatmul.mubr.f32.gmra.mrb[0].mxu0 %v842
        %v932 = vpop.f32.mrb[0].mxu0
        %v933 = vadd.f32 %v833, %v932
        %v934 = vpop.f32.mrb[0].mxu0
        %935 = vmatprep.mubr.f32.mxu0 0.0
        %936 = vmatmul.mubr.f32.gmra.mrb[0].mxu0 %v845
        %v937 = vpop.f32.mrb[0].mxu0
        %v938 = vadd.f32 %v833, %v937
        %v939 = vpop.f32.mrb[0].mxu0
        %940 = vmatprep.mubr.f32.mxu0 0.0
        %941 = vmatmul.mubr.f32.gmra.mrb[0].mxu0 %v848
        %v942 = vpop.f32.mrb[0].mxu0
        %v943 = vadd.f32 %v833, %v942
        %v944 = vpop.f32.mrb[0].mxu0
        %945 = vmatprep.mubr.f32.mxu0 0.0
        %946 = vmatmul.mubr.f32.gmra.mrb[0].mxu0 %v851
        %v947 = vpop.f32.mrb[0].mxu0
        %v948 = vadd.f32 %v833, %v947
        %v949 = vpop.f32.mrb[0].mxu0
        %950 = vmatprep.mubr.f32.mxu0 0.0
        %951 = vmatmul.mubr.f32.gmra.mrb[0].mxu0 %v854
        %v952 = vpop.f32.mrb[0].mxu0
        %v953 = vadd.f32 %v833, %v952
        %v954 = vpop.f32.mrb[0].mxu0
        %955 = vdwg.mxu0
        %v956 = vmax.f32 %v923, 0.0
        %v957 = vmax.f32 %v928, 0.0
        %v958 = vmax.f32 %v933, 0.0
        %v959 = vmax.f32 %v938, 0.0
        %v960 = vmax.f32 %v943, 0.0
        %v961 = vmax.f32 %v948, 0.0
        %v962 = vmax.f32 %v953, 0.0
        %v963 = vmin.f32 %v956, 1.0
        %v964 = vmin.f32 %v957, 1.0
        %v965 = vmin.f32 %v958, 1.0
        %v966 = vmin.f32 %v959, 1.0
        %v967 = vmin.f32 %v960, 1.0
        %v968 = vmin.f32 %v961, 1.0
        %v969 = vmin.f32 %v962, 1.0
        %s970 = scalar_lea.vmem %s6, 8
        %v971 = vld [vmem:[%s970] sm:$0xff]
        %v972 = vstv %s758
        %v974 = vsel %vm475, %v963, 0
        %v977 = vsel %vm475, %v964, 0
        %v980 = vsel %vm475, %v965, 0
        %v983 = vsel %vm475, %v966, 0
        %v986 = vsel %vm475, %v967, 0
        %v989 = vsel %vm475, %v968, 0
        %v992 = vsel %vm475, %v969, 0
        %994 = vmatprep.subr.mxu0 0.0
        %995 = vmatpush1.msra.mxu0 %v971
        %996 = vmatprep.subr.mxu0 0.0
        %997 = vmatpush1.msra.mxu0 0.0
        %998 = vmatprep.subr.mxu0 0.0
        %999 = vmatpush1.msra.mxu0 0.0
        %1000 = vmatprep.subr.mxu0 0.0
        %1001 = vmatpush1.msra.mxu0 0.0
        %1002 = vmatprep.subr.mxu0 0.0
        %1003 = vmatpush1.msra.mxu0 0.0
        %1004 = vmatprep.subr.mxu0 0.0
        %1005 = vmatpush1.msra.mxu0 0.0
        %1006 = vmatprep.subr.mxu0 0.0
        %1007 = vmatpush1.msra.mxu0 0.0
        %1008 = vmatprep.subr.mxu0 0.0
        %1009 = vmatpush1.msra.mxu0 0.0
        %1010 = vmatprep.subr.mxu0 0.0
        %1011 = vmatpush1.msra.mxu0 0.0
        %1012 = vmatprep.subr.mxu0 0.0
        %1013 = vmatpush1.msra.mxu0 0.0
        %1014 = vmatprep.subr.mxu0 0.0
        %1015 = vmatpush1.msra.mxu0 0.0
        %1016 = vmatprep.subr.mxu0 0.0
        %1017 = vmatpush1.msra.mxu0 0.0
        %1018 = vmatprep.subr.mxu0 0.0
        %1019 = vmatpush1.msra.mxu0 0.0
        %1020 = vmatprep.subr.mxu0 0.0
        %1021 = vmatpush1.msra.mxu0 0.0
        %1022 = vmatprep.subr.mxu0 0.0
        %1023 = vmatpush1.msra.mxu0 0.0
        %1024 = vmatprep.subr.mxu0 0.0
        %1025 = vmatpush1.msra.mxu0 0.0
        %1026 = vmatprep.subr.mxu0 0.0
        %1027 = vmatpush1.msra.mxu0 0.0
        %1028 = vmatprep.subr.mxu0 0.0
        %1029 = vmatpush1.msra.mxu0 0.0
        %1030 = vmatprep.subr.mxu0 0.0
        %1031 = vmatpush1.msra.mxu0 0.0
        %1032 = vmatprep.subr.mxu0 0.0
        %1033 = vmatpush1.msra.mxu0 0.0
        %1034 = vmatprep.subr.mxu0 0.0
        %1035 = vmatpush1.msra.mxu0 0.0
        %1036 = vmatprep.subr.mxu0 0.0
        %1037 = vmatpush1.msra.mxu0 0.0
        %1038 = vmatprep.subr.mxu0 0.0
        %1039 = vmatpush1.msra.mxu0 0.0
        %1040 = vmatprep.subr.mxu0 0.0
        %1041 = vmatpush1.msra.mxu0 0.0
        %1042 = vmatprep.subr.mxu0 0.0
        %1043 = vmatpush1.msra.mxu0 0.0
        %1044 = vmatprep.subr.mxu0 0.0
        %1045 = vmatpush1.msra.mxu0 0.0
        %1046 = vmatprep.subr.mxu0 0.0
        %1047 = vmatpush1.msra.mxu0 0.0
        %1048 = vmatprep.subr.mxu0 0.0
        %1049 = vmatpush1.msra.mxu0 0.0
        %1050 = vmatprep.subr.mxu0 0.0
        %1051 = vmatpush1.msra.mxu0 0.0
        %1052 = vmatprep.subr.mxu0 0.0
        %1053 = vmatpush1.msra.mxu0 0.0
        %1054 = vmatprep.subr.mxu0 0.0
        %1055 = vmatpush1.msra.mxu0 0.0
        %1056 = vmatprep.subr.mxu0 0.0
        %1057 = vmatpush1.msra.mxu0 0.0
        %1058 = vmatprep.mubr.f32.mxu0 0.0
        %1059 = vmatmul.mubr.f32.gmra.mrb[0].mxu0 %v974
        %v1060 = vpop.f32.mrb[0].mxu0
        %v1061 = vadd.f32 %v972, %v1060
        %v1062 = vpop.f32.mrb[0].mxu0
        %1063 = vmatprep.mubr.f32.mxu0 0.0
        %1064 = vmatmul.mubr.f32.gmra.mrb[0].mxu0 %v977
        %v1065 = vpop.f32.mrb[0].mxu0
        %v1066 = vadd.f32 %v972, %v1065
        %v1067 = vpop.f32.mrb[0].mxu0
        %1068 = vmatprep.mubr.f32.mxu0 0.0
        %1069 = vmatmul.mubr.f32.gmra.mrb[0].mxu0 %v980
        %v1070 = vpop.f32.mrb[0].mxu0
        %v1071 = vadd.f32 %v972, %v1070
        %v1072 = vpop.f32.mrb[0].mxu0
        %1073 = vmatprep.mubr.f32.mxu0 0.0
        %1074 = vmatmul.mubr.f32.gmra.mrb[0].mxu0 %v983
        %v1075 = vpop.f32.mrb[0].mxu0
        %v1076 = vadd.f32 %v972, %v1075
        %v1077 = vpop.f32.mrb[0].mxu0
        %1078 = vmatprep.mubr.f32.mxu0 0.0
        %1079 = vmatmul.mubr.f32.gmra.mrb[0].mxu0 %v986
        %v1080 = vpop.f32.mrb[0].mxu0
        %v1081 = vadd.f32 %v972, %v1080
        %v1082 = vpop.f32.mrb[0].mxu0
        %1083 = vmatprep.mubr.f32.mxu0 0.0
        %1084 = vmatmul.mubr.f32.gmra.mrb[0].mxu0 %v989
        %v1085 = vpop.f32.mrb[0].mxu0
        %v1086 = vadd.f32 %v972, %v1085
        %v1087 = vpop.f32.mrb[0].mxu0
        %1088 = vmatprep.mubr.f32.mxu0 0.0
        %1089 = vmatmul.mubr.f32.gmra.mrb[0].mxu0 %v992
        %v1090 = vpop.f32.mrb[0].mxu0
        %v1091 = vadd.f32 %v972, %v1090
        %v1092 = vpop.f32.mrb[0].mxu0
        %1093 = vdwg.mxu0
        %v1094 = vmax.f32 %v1061, 0.0
        %v1095 = vmax.f32 %v1066, 0.0
        %v1096 = vmax.f32 %v1071, 0.0
        %v1097 = vmax.f32 %v1076, 0.0
        %v1098 = vmax.f32 %v1081, 0.0
        %v1099 = vmax.f32 %v1086, 0.0
        %v1100 = vmax.f32 %v1091, 0.0
        %v1101 = vmin.f32 %v1094, 1.0
        %v1102 = vmin.f32 %v1095, 1.0
        %v1103 = vmin.f32 %v1096, 1.0
        %v1104 = vmin.f32 %v1097, 1.0
        %v1105 = vmin.f32 %v1098, 1.0
        %v1106 = vmin.f32 %v1099, 1.0
        %v1107 = vmin.f32 %v1100, 1.0
        %v1108 = vstv %s759
        %v1109 = vmul.f32 %v1108, %v1101
        %v1110 = vmul.f32 %v1108, %v1102
        %v1111 = vmul.f32 %v1108, %v1103
        %v1112 = vmul.f32 %v1108, %v1104
        %v1113 = vmul.f32 %v1108, %v1105
        %v1114 = vmul.f32 %v1108, %v1106
        %v1115 = vmul.f32 %v1108, %v1107
        %v1116 = vadd.f32 %v749, %v1109
        %v1117 = vadd.f32 %v750, %v1110
        %v1118 = vadd.f32 %v751, %v1111
        %v1119 = vadd.f32 %v752, %v1112
        %v1120 = vadd.f32 %v753, %v1113
        %v1121 = vadd.f32 %v754, %v1114
        %v1122 = vadd.f32 %v755, %v1115
        %s1123 = sld [smem:[#allocation2 + $0x8]]
        %s1124 = sld [smem:[#allocation2 + $0x9]]
        %s1125 = sld [smem:[#allocation2 + $0xa]]
        %s1126 = sld [smem:[#allocation2 + $0xf]]
        %v1127 = vld [vmem:[%s387] sm:$0xff]
        %v1128 = vld [vmem:[%s387 + $0x8] sm:$0xff]
        %v1129 = vld [vmem:[%s387 + $0x10] sm:$0xff]
        %v1130 = vld [vmem:[%s387 + $0x18] sm:$0xff]
        %v1131 = vld [vmem:[%s387 + $0x20] sm:$0xff]
        %v1132 = vld [vmem:[%s387 + $0x28] sm:$0xff]
        %v1133 = vld [vmem:[%s387 + $0x30] sm:$0xff]
        %v1134 = vstv %s1123
        %v1135 = vmul.f32 %v1127, %v1134
        %v1136 = vmul.f32 %v1128, %v1134
        %v1137 = vmul.f32 %v1129, %v1134
        %v1138 = vmul.f32 %v1130, %v1134
        %v1139 = vmul.f32 %v1131, %v1134
        %v1140 = vmul.f32 %v1132, %v1134
        %v1141 = vmul.f32 %v1133, %v1134
        %v1142 = vstv %s1124
        %v1143 = vsub.f32 %v1142, %v1135
        %v1144 = vsub.f32 %v1142, %v1136
        %v1145 = vsub.f32 %v1142, %v1137
        %v1146 = vsub.f32 %v1142, %v1138
        %v1147 = vsub.f32 %v1142, %v1139
        %v1148 = vsub.f32 %v1142, %v1140
        %v1149 = vsub.f32 %v1142, %v1141
        %vm1150 = vcmp.eq.f32.partialorder %v1143, %v1142
        %vm1151 = vcmp.eq.f32.partialorder %v1144, %v1142
        %vm1152 = vcmp.eq.f32.partialorder %v1145, %v1142
        %vm1153 = vcmp.eq.f32.partialorder %v1146, %v1142
        %vm1154 = vcmp.eq.f32.partialorder %v1147, %v1142
        %vm1155 = vcmp.eq.f32.partialorder %v1148, %v1142
        %vm1156 = vcmp.eq.f32.partialorder %v1149, %v1142
        %v1157 = vsel %vm1150, -10.0, %v1143
        %v1158 = vsel %vm1151, -10.0, %v1144
        %v1159 = vsel %vm1152, -10.0, %v1145
        %v1160 = vsel %vm1153, -10.0, %v1146
        %v1161 = vsel %vm1154, -10.0, %v1147
        %v1162 = vsel %vm1155, -10.0, %v1148
        %v1163 = vsel %vm1156, -10.0, %v1149
        %v1164 = vmul.f32 %v1157, 0.5
        %v1165 = vmul.f32 %v1158, 0.5
        %v1166 = vmul.f32 %v1159, 0.5
        %v1167 = vmul.f32 %v1160, 0.5
        %v1168 = vmul.f32 %v1161, 0.5
        %v1169 = vmul.f32 %v1162, 0.5
        %v1170 = vmul.f32 %v1163, 0.5
        %v1171 = vtanh.pop %v1164
        %v1172 = vtanh.pop %v1165
        %v1173 = vtanh.pop %v1166
        %v1174 = vtanh.pop %v1167
        %v1175 = vtanh.pop %v1168
        %v1176 = vtanh.pop %v1169
        %v1177 = vtanh.pop %v1170
        %v1178 = vmul.f32 %v1171, 0.5
        %v1179 = vmul.f32 %v1172, 0.5
        %v1180 = vmul.f32 %v1173, 0.5
        %v1181 = vmul.f32 %v1174, 0.5
        %v1182 = vmul.f32 %v1175, 0.5
        %v1183 = vmul.f32 %v1176, 0.5
        %v1184 = vmul.f32 %v1177, 0.5
        %v1185 = vadd.f32 %v1178, 0.5
        %v1186 = vadd.f32 %v1179, 0.5
        %v1187 = vadd.f32 %v1180, 0.5
        %v1188 = vadd.f32 %v1181, 0.5
        %v1189 = vadd.f32 %v1182, 0.5
        %v1190 = vadd.f32 %v1183, 0.5
        %v1191 = vadd.f32 %v1184, 0.5
        %s1192 = scalar_lea.vmem %s4, 16
        %v1193 = vld [vmem:[%s1192] sm:$0xff]
        %s1194 = scalar_lea.vmem %s5, 2
        %v1195 = vld [vmem:[%s1194] sm:$0x1]
        %v1197 = vlaneseq
        %v1198 = vshrl.u32 %v1197, 7
        %v1199 = vsub.s32 0, %v1198
        %v1200 = vrot.slane %v1195, %v1199
        %v1203 = vsel %vm475, %v1185, 0
        %v1206 = vsel %vm475, %v1186, 0
        %v1209 = vsel %vm475, %v1187, 0
        %v1212 = vsel %vm475, %v1188, 0
        %v1215 = vsel %vm475, %v1189, 0
        %v1218 = vsel %vm475, %v1190, 0
        %v1221 = vsel %vm475, %v1191, 0
        %1223 = vmatprep.subr.mxu0 0.0
        %1224 = vmatpush1.msra.mxu0 %v1193
        %1225 = vmatprep.subr.mxu0 0.0
        %1226 = vmatpush1.msra.mxu0 0.0
        %1227 = vmatprep.subr.mxu0 0.0
        %1228 = vmatpush1.msra.mxu0 0.0
        %1229 = vmatprep.subr.mxu0 0.0
        %1230 = vmatpush1.msra.mxu0 0.0
        %1231 = vmatprep.subr.mxu0 0.0
        %1232 = vmatpush1.msra.mxu0 0.0
        %1233 = vmatprep.subr.mxu0 0.0
        %1234 = vmatpush1.msra.mxu0 0.0
        %1235 = vmatprep.subr.mxu0 0.0
        %1236 = vmatpush1.msra.mxu0 0.0
        %1237 = vmatprep.subr.mxu0 0.0
        %1238 = vmatpush1.msra.mxu0 0.0
        %1239 = vmatprep.subr.mxu0 0.0
        %1240 = vmatpush1.msra.mxu0 0.0
        %1241 = vmatprep.subr.mxu0 0.0
        %1242 = vmatpush1.msra.mxu0 0.0
        %1243 = vmatprep.subr.mxu0 0.0
        %1244 = vmatpush1.msra.mxu0 0.0
        %1245 = vmatprep.subr.mxu0 0.0
        %1246 = vmatpush1.msra.mxu0 0.0
        %1247 = vmatprep.subr.mxu0 0.0
        %1248 = vmatpush1.msra.mxu0 0.0
        %1249 = vmatprep.subr.mxu0 0.0
        %1250 = vmatpush1.msra.mxu0 0.0
        %1251 = vmatprep.subr.mxu0 0.0
        %1252 = vmatpush1.msra.mxu0 0.0
        %1253 = vmatprep.subr.mxu0 0.0
        %1254 = vmatpush1.msra.mxu0 0.0
        %1255 = vmatprep.subr.mxu0 0.0
        %1256 = vmatpush1.msra.mxu0 0.0
        %1257 = vmatprep.subr.mxu0 0.0
        %1258 = vmatpush1.msra.mxu0 0.0
        %1259 = vmatprep.subr.mxu0 0.0
        %1260 = vmatpush1.msra.mxu0 0.0
        %1261 = vmatprep.subr.mxu0 0.0
        %1262 = vmatpush1.msra.mxu0 0.0
        %1263 = vmatprep.subr.mxu0 0.0
        %1264 = vmatpush1.msra.mxu0 0.0
        %1265 = vmatprep.subr.mxu0 0.0
        %1266 = vmatpush1.msra.mxu0 0.0
        %1267 = vmatprep.subr.mxu0 0.0
        %1268 = vmatpush1.msra.mxu0 0.0
        %1269 = vmatprep.subr.mxu0 0.0
        %1270 = vmatpush1.msra.mxu0 0.0
        %1271 = vmatprep.subr.mxu0 0.0
        %1272 = vmatpush1.msra.mxu0 0.0
        %1273 = vmatprep.subr.mxu0 0.0
        %1274 = vmatpush1.msra.mxu0 0.0
        %1275 = vmatprep.subr.mxu0 0.0
        %1276 = vmatpush1.msra.mxu0 0.0
        %1277 = vmatprep.subr.mxu0 0.0
        %1278 = vmatpush1.msra.mxu0 0.0
        %1279 = vmatprep.subr.mxu0 0.0
        %1280 = vmatpush1.msra.mxu0 0.0
        %1281 = vmatprep.subr.mxu0 0.0
        %1282 = vmatpush1.msra.mxu0 0.0
        %1283 = vmatprep.subr.mxu0 0.0
        %1284 = vmatpush1.msra.mxu0 0.0
        %1285 = vmatprep.subr.mxu0 0.0
        %1286 = vmatpush1.msra.mxu0 0.0
        %1287 = vmatprep.mubr.f32.mxu0 0.0
        %1288 = vmatmul.mubr.f32.gmra.mrb[0].mxu0 %v1203
        %v1289 = vpop.f32.mrb[0].mxu0
        %v1290 = vadd.f32 %v1200, %v1289
        %v1291 = vpop.f32.mrb[0].mxu0
        %1292 = vmatprep.mubr.f32.mxu0 0.0
        %1293 = vmatmul.mubr.f32.gmra.mrb[0].mxu0 %v1206
        %v1294 = vpop.f32.mrb[0].mxu0
        %v1295 = vadd.f32 %v1200, %v1294
        %v1296 = vpop.f32.mrb[0].mxu0
        %1297 = vmatprep.mubr.f32.mxu0 0.0
        %1298 = vmatmul.mubr.f32.gmra.mrb[0].mxu0 %v1209
        %v1299 = vpop.f32.mrb[0].mxu0
        %v1300 = vadd.f32 %v1200, %v1299
        %v1301 = vpop.f32.mrb[0].mxu0
        %1302 = vmatprep.mubr.f32.mxu0 0.0
        %1303 = vmatmul.mubr.f32.gmra.mrb[0].mxu0 %v1212
        %v1304 = vpop.f32.mrb[0].mxu0
        %v1305 = vadd.f32 %v1200, %v1304
        %v1306 = vpop.f32.mrb[0].mxu0
        %1307 = vmatprep.mubr.f32.mxu0 0.0
        %1308 = vmatmul.mubr.f32.gmra.mrb[0].mxu0 %v1215
        %v1309 = vpop.f32.mrb[0].mxu0
        %v1310 = vadd.f32 %v1200, %v1309
        %v1311 = vpop.f32.mrb[0].mxu0
        %1312 = vmatprep.mubr.f32.mxu0 0.0
        %1313 = vmatmul.mubr.f32.gmra.mrb[0].mxu0 %v1218
        %v1314 = vpop.f32.mrb[0].mxu0
        %v1315 = vadd.f32 %v1200, %v1314
        %v1316 = vpop.f32.mrb[0].mxu0
        %1317 = vmatprep.mubr.f32.mxu0 0.0
        %1318 = vmatmul.mubr.f32.gmra.mrb[0].mxu0 %v1221
        %v1319 = vpop.f32.mrb[0].mxu0
        %v1320 = vadd.f32 %v1200, %v1319
        %v1321 = vpop.f32.mrb[0].mxu0
        %1322 = vdwg.mxu0
        %v1323 = vmax.f32 %v1290, 0.0
        %v1324 = vmax.f32 %v1295, 0.0
        %v1325 = vmax.f32 %v1300, 0.0
        %v1326 = vmax.f32 %v1305, 0.0
        %v1327 = vmax.f32 %v1310, 0.0
        %v1328 = vmax.f32 %v1315, 0.0
        %v1329 = vmax.f32 %v1320, 0.0
        %v1330 = vmin.f32 %v1323, 1.0
        %v1331 = vmin.f32 %v1324, 1.0
        %v1332 = vmin.f32 %v1325, 1.0
        %v1333 = vmin.f32 %v1326, 1.0
        %v1334 = vmin.f32 %v1327, 1.0
        %v1335 = vmin.f32 %v1328, 1.0
        %v1336 = vmin.f32 %v1329, 1.0
        %s1337 = scalar_lea.vmem %s6, 16
        %v1338 = vld [vmem:[%s1337] sm:$0xff]
        %v1339 = vstv %s1125
        %v1341 = vsel %vm475, %v1330, 0
        %v1344 = vsel %vm475, %v1331, 0
        %v1347 = vsel %vm475, %v1332, 0
        %v1350 = vsel %vm475, %v1333, 0
        %v1353 = vsel %vm475, %v1334, 0
        %v1356 = vsel %vm475, %v1335, 0
        %v1359 = vsel %vm475, %v1336, 0
        %1361 = vmatprep.subr.mxu0 0.0
        %1362 = vmatpush1.msra.mxu0 %v1338
        %1363 = vmatprep.subr.mxu0 0.0
        %1364 = vmatpush1.msra.mxu0 0.0
        %1365 = vmatprep.subr.mxu0 0.0
        %1366 = vmatpush1.msra.mxu0 0.0
        %1367 = vmatprep.subr.mxu0 0.0
        %1368 = vmatpush1.msra.mxu0 0.0
        %1369 = vmatprep.subr.mxu0 0.0
        %1370 = vmatpush1.msra.mxu0 0.0
        %1371 = vmatprep.subr.mxu0 0.0
        %1372 = vmatpush1.msra.mxu0 0.0
        %1373 = vmatprep.subr.mxu0 0.0
        %1374 = vmatpush1.msra.mxu0 0.0
        %1375 = vmatprep.subr.mxu0 0.0
        %1376 = vmatpush1.msra.mxu0 0.0
        %1377 = vmatprep.subr.mxu0 0.0
        %1378 = vmatpush1.msra.mxu0 0.0
        %1379 = vmatprep.subr.mxu0 0.0
        %1380 = vmatpush1.msra.mxu0 0.0
        %1381 = vmatprep.subr.mxu0 0.0
        %1382 = vmatpush1.msra.mxu0 0.0
        %1383 = vmatprep.subr.mxu0 0.0
        %1384 = vmatpush1.msra.mxu0 0.0
        %1385 = vmatprep.subr.mxu0 0.0
        %1386 = vmatpush1.msra.mxu0 0.0
        %1387 = vmatprep.subr.mxu0 0.0
        %1388 = vmatpush1.msra.mxu0 0.0
        %1389 = vmatprep.subr.mxu0 0.0
        %1390 = vmatpush1.msra.mxu0 0.0
        %1391 = vmatprep.subr.mxu0 0.0
        %1392 = vmatpush1.msra.mxu0 0.0
        %1393 = vmatprep.subr.mxu0 0.0
        %1394 = vmatpush1.msra.mxu0 0.0
        %1395 = vmatprep.subr.mxu0 0.0
        %1396 = vmatpush1.msra.mxu0 0.0
        %1397 = vmatprep.subr.mxu0 0.0
        %1398 = vmatpush1.msra.mxu0 0.0
        %1399 = vmatprep.subr.mxu0 0.0
        %1400 = vmatpush1.msra.mxu0 0.0
        %1401 = vmatprep.subr.mxu0 0.0
        %1402 = vmatpush1.msra.mxu0 0.0
        %1403 = vmatprep.subr.mxu0 0.0
        %1404 = vmatpush1.msra.mxu0 0.0
        %1405 = vmatprep.subr.mxu0 0.0
        %1406 = vmatpush1.msra.mxu0 0.0
        %1407 = vmatprep.subr.mxu0 0.0
        %1408 = vmatpush1.msra.mxu0 0.0
        %1409 = vmatprep.subr.mxu0 0.0
        %1410 = vmatpush1.msra.mxu0 0.0
        %1411 = vmatprep.subr.mxu0 0.0
        %1412 = vmatpush1.msra.mxu0 0.0
        %1413 = vmatprep.subr.mxu0 0.0
        %1414 = vmatpush1.msra.mxu0 0.0
        %1415 = vmatprep.subr.mxu0 0.0
        %1416 = vmatpush1.msra.mxu0 0.0
        %1417 = vmatprep.subr.mxu0 0.0
        %1418 = vmatpush1.msra.mxu0 0.0
        %1419 = vmatprep.subr.mxu0 0.0
        %1420 = vmatpush1.msra.mxu0 0.0
        %1421 = vmatprep.subr.mxu0 0.0
        %1422 = vmatpush1.msra.mxu0 0.0
        %1423 = vmatprep.subr.mxu0 0.0
        %1424 = vmatpush1.msra.mxu0 0.0
        %1425 = vmatprep.mubr.f32.mxu0 0.0
        %1426 = vmatmul.mubr.f32.gmra.mrb[0].mxu0 %v1341
        %v1427 = vpop.f32.mrb[0].mxu0
        %v1428 = vadd.f32 %v1339, %v1427
        %v1429 = vpop.f32.mrb[0].mxu0
        %1430 = vmatprep.mubr.f32.mxu0 0.0
        %1431 = vmatmul.mubr.f32.gmra.mrb[0].mxu0 %v1344
        %v1432 = vpop.f32.mrb[0].mxu0
        %v1433 = vadd.f32 %v1339, %v1432
        %v1434 = vpop.f32.mrb[0].mxu0
        %1435 = vmatprep.mubr.f32.mxu0 0.0
        %1436 = vmatmul.mubr.f32.gmra.mrb[0].mxu0 %v1347
        %v1437 = vpop.f32.mrb[0].mxu0
        %v1438 = vadd.f32 %v1339, %v1437
        %v1439 = vpop.f32.mrb[0].mxu0
        %1440 = vmatprep.mubr.f32.mxu0 0.0
        %1441 = vmatmul.mubr.f32.gmra.mrb[0].mxu0 %v1350
        %v1442 = vpop.f32.mrb[0].mxu0
        %v1443 = vadd.f32 %v1339, %v1442
        %v1444 = vpop.f32.mrb[0].mxu0
        %1445 = vmatprep.mubr.f32.mxu0 0.0
        %1446 = vmatmul.mubr.f32.gmra.mrb[0].mxu0 %v1353
        %v1447 = vpop.f32.mrb[0].mxu0
        %v1448 = vadd.f32 %v1339, %v1447
        %v1449 = vpop.f32.mrb[0].mxu0
        %1450 = vmatprep.mubr.f32.mxu0 0.0
        %1451 = vmatmul.mubr.f32.gmra.mrb[0].mxu0 %v1356
        %v1452 = vpop.f32.mrb[0].mxu0
        %v1453 = vadd.f32 %v1339, %v1452
        %v1454 = vpop.f32.mrb[0].mxu0
        %1455 = vmatprep.mubr.f32.mxu0 0.0
        %1456 = vmatmul.mubr.f32.gmra.mrb[0].mxu0 %v1359
        %v1457 = vpop.f32.mrb[0].mxu0
        %v1458 = vadd.f32 %v1339, %v1457
        %v1459 = vpop.f32.mrb[0].mxu0
        %1460 = vdwg.mxu0
        %v1461 = vmax.f32 %v1428, 0.0
        %v1462 = vmax.f32 %v1433, 0.0
        %v1463 = vmax.f32 %v1438, 0.0
        %v1464 = vmax.f32 %v1443, 0.0
        %v1465 = vmax.f32 %v1448, 0.0
        %v1466 = vmax.f32 %v1453, 0.0
        %v1467 = vmax.f32 %v1458, 0.0
        %v1468 = vmin.f32 %v1461, 1.0
        %v1469 = vmin.f32 %v1462, 1.0
        %v1470 = vmin.f32 %v1463, 1.0
        %v1471 = vmin.f32 %v1464, 1.0
        %v1472 = vmin.f32 %v1465, 1.0
        %v1473 = vmin.f32 %v1466, 1.0
        %v1474 = vmin.f32 %v1467, 1.0
        %v1475 = vstv %s1126
        %v1476 = vmul.f32 %v1475, %v1468
        %v1477 = vmul.f32 %v1475, %v1469
        %v1478 = vmul.f32 %v1475, %v1470
        %v1479 = vmul.f32 %v1475, %v1471
        %v1480 = vmul.f32 %v1475, %v1472
        %v1481 = vmul.f32 %v1475, %v1473
        %v1482 = vmul.f32 %v1475, %v1474
        %v1483 = vadd.f32 %v1116, %v1476
        %v1484 = vadd.f32 %v1117, %v1477
        %v1485 = vadd.f32 %v1118, %v1478
        %v1486 = vadd.f32 %v1119, %v1479
        %v1487 = vadd.f32 %v1120, %v1480
        %v1488 = vadd.f32 %v1121, %v1481
        %v1489 = vadd.f32 %v1122, %v1482
        %s1490 = sld [smem:[#allocation2 + $0xc]]
        %v1491 = vstv %s1490
        %v1492 = vadd.f32 %v1491, %v1483
        %v1493 = vadd.f32 %v1491, %v1484
        %v1494 = vadd.f32 %v1491, %v1485
        %v1495 = vadd.f32 %v1491, %v1486
        %v1496 = vadd.f32 %v1491, %v1487
        %v1497 = vadd.f32 %v1491, %v1488
        %v1498 = vadd.f32 %v1491, %v1489
        %v1499 = vmax.f32 %v1492, 0.0
        %v1500 = vmax.f32 %v1493, 0.0
        %v1501 = vmax.f32 %v1494, 0.0
        %v1502 = vmax.f32 %v1495, 0.0
        %v1503 = vmax.f32 %v1496, 0.0
        %v1504 = vmax.f32 %v1497, 0.0
        %v1505 = vmax.f32 %v1498, 0.0
        %v1506 = vmin.f32 %v1499, 1.0
        %v1507 = vmin.f32 %v1500, 1.0
        %v1508 = vmin.f32 %v1501, 1.0
        %v1509 = vmin.f32 %v1502, 1.0
        %v1510 = vmin.f32 %v1503, 1.0
        %v1511 = vmin.f32 %v1504, 1.0
        %v1512 = vmin.f32 %v1505, 1.0
        %vm1513 = vcmask 7168
        %1514 = vst.msk [vmem:[%s350] sm:$0xff] %vm1513, %v1506
        %1515 = vst.msk [vmem:[%s350 + $0x8] sm:$0xff] %vm1513, %v1507
        %1516 = vst.msk [vmem:[%s350 + $0x10] sm:$0xff] %vm1513, %v1508
        %1517 = vst.msk [vmem:[%s350 + $0x18] sm:$0xff] %vm1513, %v1509
        %1518 = vst.msk [vmem:[%s350 + $0x20] sm:$0xff] %vm1513, %v1510
        %1519 = vst.msk [vmem:[%s350 + $0x28] sm:$0xff] %vm1513, %v1511
        %1520 = vst.msk [vmem:[%s350 + $0x30] sm:$0xff] %vm1513, %v1512
        %s1521 = sand.u32 %s189, 1
        %s1522 = sand.u32 %s189, 1
        %s1523 = smul.addr %s1522, 56
        %s1524 = scalar_lea.vmem [#allocation4], %s1523
        // Predicated region
        $region53: #{tl_nn5_forward.1} parent=47 // pred_check
          %p1525 = pneg %p199
        $region54: #{tl_nn5_forward.1} parent=47 // pred_check_branch
          %1527 = sbr.rel (%p1525) target = $region56
        $region55: #{tl_nn5_forward.1} parent=47 // pred_region
          %s1528 = smul.u32 7, %s19
          %s1529 = ssub.s32 13, %s1528
          %p1530 = scmp.lt.s32.totalorder %s1529, 7
          %s1531 = scalar_select %p1530, %s1529, 7
          %s1532 = smul.u32 128, %s1531
          %p1533 = scmp.ne.s32.totalorder 0, %s1532
          %s1534 = smul.addr %s1528, 8
          %s1535 = scalar_lea.vmem %s7, %s1534
          // Predicated region
          $region57: #{tl_nn5_forward.1} parent=55 // pred_check
            %p1536 = pneg %p1533
          $region58: #{tl_nn5_forward.1} parent=55 // pred_check_branch
            %1538 = sbr.rel (%p1536) target = $region60
          $region59: #{tl_nn5_forward.1} parent=55 // pred_region
            // Predicated region
            $region61: #{tl_nn5_forward.1} parent=59 // pred_check
              _
            $region62: #{tl_nn5_forward.1} parent=59 // pred_check_branch
              %1540 = sbr.rel (0) target = $region64
            $region63: #{tl_nn5_forward.1} parent=59 // pred_region
              // Predicated region
              $region83: #{tl_nn5_forward.1} parent=63 // pred_check
                _
              $region84: #{tl_nn5_forward.1} parent=63 // pred_check_branch
                %1602 = sbr.rel (0) target = $region86
              $region85: #{tl_nn5_forward.1} parent=63 // pred_region
                %s1603 = sdiv.u32.pop %s1531, 7
                %s1604 = srem.u32.pop %s1531, 7
                // While loop
                $region87: #{tl_nn5_forward.1} parent=85 // loop_pre_header
                  _
                $region88: #{tl_nn5_forward.1} parent=85 // loop_header
                  %s1606 = sphi 0, %s1608
                  %p1607 = scmp.ge.s32.totalorder %s1606, %s1603
                  %s1611 = sphi 0, %s1630
                  %s1612 = sphi %s1524, %s1633
                  %s1613 = sphi %s1535, %s1634
                $region89: #{tl_nn5_forward.1} parent=85 // loop_header_branch
                  %1610 = sbr.rel (%p1607) target = $region93
                $region90: #{tl_nn5_forward.1} parent=85 // loop_body
                  %v1614 = vld [vmem:[%s1612] sm:$0xff]
                  %1615 = vst [vmem:[%s1613] sm:$0xff] %v1614
                  %v1616 = vld [vmem:[%s1612 + $0x8] sm:$0xff]
                  %1617 = vst [vmem:[%s1613 + $0x8] sm:$0xff] %v1616
                  %v1618 = vld [vmem:[%s1612 + $0x10] sm:$0xff]
                  %1619 = vst [vmem:[%s1613 + $0x10] sm:$0xff] %v1618
                  %v1620 = vld [vmem:[%s1612 + $0x18] sm:$0xff]
                  %1621 = vst [vmem:[%s1613 + $0x18] sm:$0xff] %v1620
                  %v1622 = vld [vmem:[%s1612 + $0x20] sm:$0xff]
                  %1623 = vst [vmem:[%s1613 + $0x20] sm:$0xff] %v1622
                  %v1624 = vld [vmem:[%s1612 + $0x28] sm:$0xff]
                  %1625 = vst [vmem:[%s1613 + $0x28] sm:$0xff] %v1624
                  %v1626 = vld [vmem:[%s1612 + $0x30] sm:$0xff]
                  %1627 = vst [vmem:[%s1613 + $0x30] sm:$0xff] %v1626
                  %s1628 = sadd.s32 1, %s1611
                  %p1629 = scmp.ge.s32.totalorder %s1628, %s1603
                  %s1630 = scalar_select %p1629, 0, %s1628
                  %s1631 = smul.u32 %s1630, 56
                  %s1632 = smul.u32 %s1630, 56
                  %s1633 = scalar_lea.vmem %s1524, %s1631 [#allocation4]
                  %s1634 = scalar_lea.vmem %s1535, %s1632
                $region91: #{tl_nn5_forward.1} parent=85 // loop_footer
                  %s1608 = sadd.s32 %s1606, 1
                $region92: #{tl_nn5_forward.1} parent=85 // loop_footer_branch
                  %1605 = sbr.rel target = $region88
                $region93: #{tl_nn5_forward.1} parent=85 // loop_exit
                  _
                %s1635 = sdiv.u32.pop %s1531, 7
                %s1636 = srem.u32.pop %s1531, 7
                %s1637 = smul.u32 %s1635, 7
                %s1638 = smul.u32 8, %s1637
                %s1639 = scalar_lea.vmem %s1524, %s1638 [#allocation4]
                %s1640 = smul.u32 8, %s1637
                %s1641 = scalar_lea.vmem %s1535, %s1640
                // While loop
                $region94: #{tl_nn5_forward.1} parent=85 // loop_pre_header
                  _
                $region95: #{tl_nn5_forward.1} parent=85 // loop_header
                  %s1643 = sphi 0, %s1645
                  %p1644 = scmp.ge.s32.totalorder %s1643, %s1636
                  %s1648 = sphi 0, %s1655
                  %s1649 = sphi %s1639, %s1658
                  %s1650 = sphi %s1641, %s1659
                $region96: #{tl_nn5_forward.1} parent=85 // loop_header_branch
                  %1647 = sbr.rel (%p1644) target = $region100
                $region97: #{tl_nn5_forward.1} parent=85 // loop_body
                  %v1651 = vld [vmem:[%s1649] sm:$0xff]
                  %1652 = vst [vmem:[%s1650] sm:$0xff] %v1651
                  %s1653 = sadd.s32 1, %s1648
                  %p1654 = scmp.ge.s32.totalorder %s1653, %s1636
                  %s1655 = scalar_select %p1654, 0, %s1653
                  %s1656 = smul.u32 %s1655, 8
                  %s1657 = smul.u32 %s1655, 8
                  %s1658 = scalar_lea.vmem %s1639, %s1656 [#allocation4]
                  %s1659 = scalar_lea.vmem %s1641, %s1657
                $region98: #{tl_nn5_forward.1} parent=85 // loop_footer
                  %s1645 = sadd.s32 %s1643, 1
                $region99: #{tl_nn5_forward.1} parent=85 // loop_footer_branch
                  %1642 = sbr.rel target = $region95
                $region100: #{tl_nn5_forward.1} parent=85 // loop_exit
                  _
              $region86: #{tl_nn5_forward.1} parent=63 // pred_fallthru
                _
              // Predicated region
              $region101: #{tl_nn5_forward.1} parent=63 // pred_check
                _
              $region102: #{tl_nn5_forward.1} parent=63 // pred_check_branch
                %1661 = sbr.rel target = $region104
              $region103: #{tl_nn5_forward.1} parent=63 // pred_region
                _
              $region104: #{tl_nn5_forward.1} parent=63 // pred_fallthru
                _
            $region64: #{tl_nn5_forward.1} parent=59 // pred_fallthru
              _
            // Predicated region
            $region65: #{tl_nn5_forward.1} parent=59 // pred_check
              _
            $region66: #{tl_nn5_forward.1} parent=59 // pred_check_branch
              %1542 = sbr.rel target = $region68
            $region67: #{tl_nn5_forward.1} parent=59 // pred_region
              %s1544 = sdiv.u32.pop %s1531, 7
              %s1545 = srem.u32.pop %s1531, 7
              // While loop
              $region69: #{tl_nn5_forward.1} parent=67 // loop_pre_header
                _
              $region70: #{tl_nn5_forward.1} parent=67 // loop_header
                %s1547 = sphi 0, %s1549
                %p1548 = scmp.ge.s32.totalorder %s1547, %s1544
                %s1552 = sphi 0, %s1571
                %s1553 = sphi %s1524, %s1574
                %s1554 = sphi %s1535, %s1575
              $region71: #{tl_nn5_forward.1} parent=67 // loop_header_branch
                %1551 = sbr.rel (%p1548) target = $region75
              $region72: #{tl_nn5_forward.1} parent=67 // loop_body
                %v1555 = vld [vmem:[%s1553] sm:$0xff]
                %1556 = vst [vmem:[%s1554] sm:$0xff] %v1555
                %v1557 = vld [vmem:[%s1553 + $0x8] sm:$0xff]
                %1558 = vst [vmem:[%s1554 + $0x8] sm:$0xff] %v1557
                %v1559 = vld [vmem:[%s1553 + $0x10] sm:$0xff]
                %1560 = vst [vmem:[%s1554 + $0x10] sm:$0xff] %v1559
                %v1561 = vld [vmem:[%s1553 + $0x18] sm:$0xff]
                %1562 = vst [vmem:[%s1554 + $0x18] sm:$0xff] %v1561
                %v1563 = vld [vmem:[%s1553 + $0x20] sm:$0xff]
                %1564 = vst [vmem:[%s1554 + $0x20] sm:$0xff] %v1563
                %v1565 = vld [vmem:[%s1553 + $0x28] sm:$0xff]
                %1566 = vst [vmem:[%s1554 + $0x28] sm:$0xff] %v1565
                %v1567 = vld [vmem:[%s1553 + $0x30] sm:$0xff]
                %1568 = vst [vmem:[%s1554 + $0x30] sm:$0xff] %v1567
                %s1569 = sadd.s32 1, %s1552
                %p1570 = scmp.ge.s32.totalorder %s1569, %s1544
                %s1571 = scalar_select %p1570, 0, %s1569
                %s1572 = smul.u32 %s1571, 56
                %s1573 = smul.u32 %s1571, 56
                %s1574 = scalar_lea.vmem %s1524, %s1572 [#allocation4]
                %s1575 = scalar_lea.vmem %s1535, %s1573
              $region73: #{tl_nn5_forward.1} parent=67 // loop_footer
                %s1549 = sadd.s32 %s1547, 1
              $region74: #{tl_nn5_forward.1} parent=67 // loop_footer_branch
                %1546 = sbr.rel target = $region70
              $region75: #{tl_nn5_forward.1} parent=67 // loop_exit
                _
              %s1576 = sdiv.u32.pop %s1531, 7
              %s1577 = srem.u32.pop %s1531, 7
              %s1578 = smul.u32 %s1576, 7
              %s1579 = smul.u32 8, %s1578
              %s1580 = scalar_lea.vmem %s1524, %s1579 [#allocation4]
              %s1581 = smul.u32 8, %s1578
              %s1582 = scalar_lea.vmem %s1535, %s1581
              // While loop
              $region76: #{tl_nn5_forward.1} parent=67 // loop_pre_header
                _
              $region77: #{tl_nn5_forward.1} parent=67 // loop_header
                %s1584 = sphi 0, %s1586
                %p1585 = scmp.ge.s32.totalorder %s1584, %s1577
                %s1589 = sphi 0, %s1596
                %s1590 = sphi %s1580, %s1599
                %s1591 = sphi %s1582, %s1600
              $region78: #{tl_nn5_forward.1} parent=67 // loop_header_branch
                %1588 = sbr.rel (%p1585) target = $region82
              $region79: #{tl_nn5_forward.1} parent=67 // loop_body
                %v1592 = vld [vmem:[%s1590] sm:$0xff]
                %1593 = vst [vmem:[%s1591] sm:$0xff] %v1592
                %s1594 = sadd.s32 1, %s1589
                %p1595 = scmp.ge.s32.totalorder %s1594, %s1577
                %s1596 = scalar_select %p1595, 0, %s1594
                %s1597 = smul.u32 %s1596, 8
                %s1598 = smul.u32 %s1596, 8
                %s1599 = scalar_lea.vmem %s1580, %s1597 [#allocation4]
                %s1600 = scalar_lea.vmem %s1582, %s1598
              $region80: #{tl_nn5_forward.1} parent=67 // loop_footer
                %s1586 = sadd.s32 %s1584, 1
              $region81: #{tl_nn5_forward.1} parent=67 // loop_footer_branch
                %1583 = sbr.rel target = $region77
              $region82: #{tl_nn5_forward.1} parent=67 // loop_exit
                _
            $region68: #{tl_nn5_forward.1} parent=59 // pred_fallthru
              _
          $region60: #{tl_nn5_forward.1} parent=55 // pred_fallthru
            _
          %1662 = vnop
        $region56: #{tl_nn5_forward.1} parent=47 // pred_fallthru
          _
      $region48: #{tl_nn5_forward.1} parent=5 // pred_fallthru
        _
      %p1663 = scmp.le.s32.totalorder 2, %s14
      // Predicated region
      $region105: #{tl_nn5_forward.1} parent=5 // pred_check
        %p1664 = pneg %p1663
      $region106: #{tl_nn5_forward.1} parent=5 // pred_check_branch
        %1666 = sbr.rel (%p1664) target = $region108
      $region107: #{tl_nn5_forward.1} parent=5 // pred_region
        %s1667 = ssub.s32 %s14, 2
        // Predicated region
        $region109: #{tl_nn5_forward.1} parent=107 // pred_check
          %p1668 = pneg %p205
        $region110: #{tl_nn5_forward.1} parent=107 // pred_check_branch
          %1670 = sbr.rel (%p1668) target = $region112
        $region111: #{tl_nn5_forward.1} parent=107 // pred_region
          %s1671 = sand.u32 %s190, 1
          %s1672 = sand.u32 %s190, 1
          %s1673 = smul.addr %s1672, 56
          %s1674 = scalar_lea.vmem [#allocation4], %s1673
        $region112: #{tl_nn5_forward.1} parent=107 // pred_fallthru
          _
      $region108: #{tl_nn5_forward.1} parent=5 // pred_fallthru
        _
    $region6: #{tl_nn5_forward.1} parent=1 // loop_footer
      %s18 = sadd.s32 1, %s14
    $region7: #{tl_nn5_forward.1} parent=1 // loop_footer_branch
      %13 = sbr.rel target = $region3
    $region8: #{tl_nn5_forward.1} parent=1 // loop_exit
      _
    %1675 = vsyncpa [#allocation3], 1
    %s1676 = scalar_lea.sflag [#allocation3], 1
    %1677 = vsyncpa %s1676, 1

</llo_original>
